<compile_context>
chip_gen: v7x
topology: tpu7x:2x2x1
jax: 0.10.0
libtpu: 0.0.40
codegen_flags: <defaults>
</compile_context>

<pallas_src>
import functools

import jax
import jax.numpy as jnp
from jax.experimental import pallas as pl
from jax.experimental.pallas import tpu as pltpu

HIDDEN = 128


def _round_up(x, m):
    return ((x + m - 1) // m) * m


def _pick_block_b(batch, requested):
    """Pick the batch tile: as large as the batch allows (amortizes ~0.35 us of
    per-grid-step pipeline overhead), rounded to a multiple of 16 (bf16 sublane
    packing), and split so the grid has >= 2 steps when possible (v7x has two
    TensorCores that only help with >= 2 'parallel' grid steps)."""
    blk = max(16, min(requested, _round_up(batch, 16)))
    if batch > 16 and _round_up(batch, blk) // blk < 2:
        blk = _round_up(pl.cdiv(batch, 2), 16)
    return blk


def mlp_kernel(x_ref,
               w1_ref, w2_ref, w3_ref, w4_ref, wo_ref,
               bh_ref, bo_ref,
               o_ref):
    """Fully fused forward pass. MXU matmuls are bf16 x bf16 with f32
    accumulation. Hidden bias-add / ReLU run in bf16; the final layer keeps an
    f32 epilogue and writes the f32 output tile."""
    bf16 = jnp.bfloat16
    f32 = jnp.float32

    bh = bh_ref[...]                       # (8, 128) bf16; rows 0..3 = b1..b4

    # Cast activations to bf16 inside the kernel (no separate XLA pad/cast op).
    h = x_ref[...].astype(bf16)
    h = jnp.maximum(
        jnp.dot(h, w1_ref[...], preferred_element_type=f32).astype(bf16) + bh[0:1], 0)
    h = jnp.maximum(
        jnp.dot(h, w2_ref[...], preferred_element_type=f32).astype(bf16) + bh[1:2], 0)
    h = jnp.maximum(
        jnp.dot(h, w3_ref[...], preferred_element_type=f32).astype(bf16) + bh[2:3], 0)
    h = jnp.maximum(
        jnp.dot(h, w4_ref[...], preferred_element_type=f32).astype(bf16) + bh[3:4], 0)

    # fc_out: f32 accumulate + f32 bias, direct f32 store (lane-dense output).
    o_ref[...] = jnp.dot(h, wo_ref[...], preferred_element_type=f32) + bo_ref[...]


def prepare_params(params):
    """Kernel-ready params: bf16 [in, out] weights (w1 left at its natural K),
    the four hidden biases packed into one (8, 128) bf16 block, f32 output bias."""
    kp = {}
    for n in ["1", "2", "3", "4", "o"]:
        kp[f"w{n}"] = params[f"w{n}"].astype(jnp.bfloat16)
    bh = jnp.zeros((8, HIDDEN), jnp.bfloat16)
    for r, n in enumerate(["1", "2", "3", "4"]):
        bh = bh.at[r].set(params[f"b{n}"].reshape(-1).astype(jnp.bfloat16))
    kp["b_hidden"] = bh
    kp["bo"] = params["bo"].astype(jnp.float32).reshape(1, -1)
    return kp


@functools.partial(jax.jit, static_argnames=("block_b",))
def net_forward(x, kparams, *, block_b=1024):
    """x: [B, in_features] float32. kparams: output of prepare_params."""
    B, in_features = x.shape
    out_features = kparams["wo"].shape[1]

    blk = _pick_block_b(B, block_b)
    b_pad = _round_up(B, blk)
    if b_pad != B:
        # Only row-padding when B is not a tile multiple; no dtype cast here.
        x = jnp.pad(x, ((0, b_pad - B), (0, 0)))

    grid = (b_pad // blk,)

    def batch_spec(cols):
        return pl.BlockSpec((blk, cols), lambda i: (i, 0))

    def full_spec(rows, cols):
        # Constant block index across the batch grid -> Pallas skips re-fetch.
        return pl.BlockSpec((rows, cols), lambda i: (0, 0))

    flops = 2 * b_pad * (in_features * HIDDEN + 3 * HIDDEN * HIDDEN
                         + HIDDEN * out_features)
    weight_bytes = 2 * (in_features * HIDDEN + 3 * HIDDEN * HIDDEN
                        + HIDDEN * out_features)                       # bf16
    bias_bytes = 2 * 8 * HIDDEN + 4 * out_features
    bytes_accessed = (4 * b_pad * in_features        # f32 x in
                      + 4 * b_pad * out_features     # f32 out
                      + weight_bytes + bias_bytes)

    out = pl.pallas_call(
        mlp_kernel,
        out_shape=jax.ShapeDtypeStruct((b_pad, out_features), jnp.float32),
        grid_spec=pltpu.PrefetchScalarGridSpec(
            num_scalar_prefetch=0,
            grid=grid,
            in_specs=[
                batch_spec(in_features),              # x tile (f32, unpadded K)
                full_spec(in_features, HIDDEN),       # w1
                full_spec(HIDDEN, HIDDEN),            # w2
                full_spec(HIDDEN, HIDDEN),            # w3
                full_spec(HIDDEN, HIDDEN),            # w4
                full_spec(HIDDEN, out_features),      # w_out
                full_spec(8, HIDDEN),                 # packed hidden biases (bf16)
                full_spec(1, out_features),           # output bias (f32)
            ],
            out_specs=batch_spec(out_features),
        ),
        compiler_params=pltpu.CompilerParams(
            dimension_semantics=("parallel",)),       # shards grid steps across TCs
        cost_estimate=pl.CostEstimate(
            flops=flops, transcendentals=0, bytes_accessed=bytes_accessed),
    )(x,
      kparams["w1"], kparams["w2"], kparams["w3"], kparams["w4"], kparams["wo"],
      kparams["b_hidden"], kparams["bo"])

    return out[:B]


def init_params(key, in_features, out_features=128):
    """Deterministic init mimicking PyTorch Linear default (uniform +-1/sqrt(fan_in)).
    Weights are returned already transposed to [in, out]."""
    dims = [(in_features, HIDDEN), (HIDDEN, HIDDEN), (HIDDEN, HIDDEN),
            (HIDDEN, HIDDEN), (HIDDEN, out_features)]
    names = ["1", "2", "3", "4", "o"]
    params = {}
    for (fan_in, fan_out), n in zip(dims, names):
        key, kw, kb = jax.random.split(key, 3)
        bound = 1.0 / jnp.sqrt(float(fan_in))
        params[f"w{n}"] = jax.random.uniform(
            kw, (fan_in, fan_out), jnp.float32, minval=-bound, maxval=bound)
        params[f"b{n}"] = jax.random.uniform(
            kb, (1, fan_out), jnp.float32, minval=-bound, maxval=bound)
    return params


def reference_forward(x, kparams):
    """Pure-JAX reference mirroring the kernel numerics exactly: bf16 matmuls
    with f32 accumulation, bf16 hidden bias/ReLU, f32 final layer."""
    bf16 = jnp.bfloat16
    bh = kparams["b_hidden"]
    h = x.astype(bf16)
    for r, n in enumerate(["1", "2", "3", "4"]):
        h = jnp.maximum(
            jnp.dot(h, kparams[f"w{n}"],
                    preferred_element_type=jnp.float32).astype(bf16) + bh[r:r + 1], 0)
    return jnp.dot(h, kparams["wo"],
                   preferred_element_type=jnp.float32) + kparams["bo"]


if __name__ == "__main__":
    in_features = 32
    out_features = 128
    batch = 512          # -> two grid steps of 256 rows each (both TCs on v7x)

    key = jax.random.PRNGKey(0)
    key, kx = jax.random.split(key)
    x = jax.random.normal(kx, (batch, in_features), dtype=jnp.float32)

    params = init_params(key, in_features, out_features)
    kparams = prepare_params(params)

    out = net_forward(x, kparams)
    out = jax.block_until_ready(out)

    ref = reference_forward(x, kparams)
    assert out.shape == (batch, out_features)
    assert jnp.allclose(out, ref, atol=1e-2, rtol=1e-2), "mismatch vs JAX reference"

    print("KERNEL_OK")
</pallas_src>

<mosaic_0001>
module attributes {stable_mosaic.version = 11 : i64} {
  func.func @mlp_kernel(%arg0: i32, %arg1: memref<256x32xf32, #tpu.memory_space<vmem>>, %arg2: memref<32x128xbf16, #tpu.memory_space<vmem>>, %arg3: memref<128x128xbf16, #tpu.memory_space<vmem>>, %arg4: memref<128x128xbf16, #tpu.memory_space<vmem>>, %arg5: memref<128x128xbf16, #tpu.memory_space<vmem>>, %arg6: memref<128x128xbf16, #tpu.memory_space<vmem>>, %arg7: memref<8x128xbf16, #tpu.memory_space<vmem>>, %arg8: memref<1x128xf32, #tpu.memory_space<vmem>>, %arg9: memref<256x128xf32, #tpu.memory_space<vmem>>) attributes {dimension_semantics = [#tpu.dimension_semantics<parallel>], iteration_bounds = array<i64: 2>, scalar_prefetch = 0 : i64, scratch_operands = 0 : i64, tpu.core_type = #tpu.core_type<tc>, window_params = [{transform_indices = @transform_0, window_bounds = array<i64: 256, 32>}, {pipeline_mode = #tpu.pipeline_mode<synchronous>, transform_indices = @transform_1, window_bounds = array<i64: 32, 128>}, {pipeline_mode = #tpu.pipeline_mode<synchronous>, transform_indices = @transform_2, window_bounds = array<i64: 128, 128>}, {pipeline_mode = #tpu.pipeline_mode<synchronous>, transform_indices = @transform_3, window_bounds = array<i64: 128, 128>}, {pipeline_mode = #tpu.pipeline_mode<synchronous>, transform_indices = @transform_4, window_bounds = array<i64: 128, 128>}, {pipeline_mode = #tpu.pipeline_mode<synchronous>, transform_indices = @transform_5, window_bounds = array<i64: 128, 128>}, {pipeline_mode = #tpu.pipeline_mode<synchronous>, transform_indices = @transform_6, window_bounds = array<i64: 8, 128>}, {pipeline_mode = #tpu.pipeline_mode<synchronous>, transform_indices = @transform_7, window_bounds = array<i64: 1, 128>}, {transform_indices = @transform_8, window_bounds = array<i64: 256, 128>}]} {
    %c0 = arith.constant 0 : index
    %c0_0 = arith.constant 0 : index
    %0 = vector.load %arg7[%c0, %c0_0] : memref<8x128xbf16, #tpu.memory_space<vmem>>, vector<8x128xbf16>
    %c0_1 = arith.constant 0 : index
    %c0_2 = arith.constant 0 : index
    %1 = vector.load %arg1[%c0_1, %c0_2] : memref<256x32xf32, #tpu.memory_space<vmem>>, vector<256x32xf32>
    %2 = arith.truncf %1 : vector<256x32xf32> to vector<256x32xbf16>
    %c0_3 = arith.constant 0 : index
    %c0_4 = arith.constant 0 : index
    %3 = vector.load %arg2[%c0_3, %c0_4] : memref<32x128xbf16, #tpu.memory_space<vmem>>, vector<32x128xbf16>
    %cst = arith.constant dense<0.000000e+00> : vector<256x128xf32>
    %4 = tpu.matmul %2, %3, %cst {dimension_numbers = #tpu.dot_dimension_numbers<[1], [0], [0], [1], [0, 0, 1, 1], [], []>} : vector<256x32xbf16>, vector<32x128xbf16>, vector<256x128xf32> -> vector<256x128xf32>
    %5 = arith.truncf %4 : vector<256x128xf32> to vector<256x128xbf16>
    %6 = vector.extract_strided_slice %0 {offsets = [0, 0], sizes = [1, 128], strides = [1, 1]} : vector<8x128xbf16> to vector<1x128xbf16>
    %7 = vector.broadcast %6 : vector<1x128xbf16> to vector<256x128xbf16>
    %8 = arith.addf %5, %7 : vector<256x128xbf16>
    %cst_5 = arith.constant 0.000000e+00 : bf16
    %9 = vector.broadcast %cst_5 : bf16 to vector<256x128xbf16>
    %10 = arith.maximumf %8, %9 : vector<256x128xbf16>
    %c0_6 = arith.constant 0 : index
    %c0_7 = arith.constant 0 : index
    %11 = vector.load %arg3[%c0_6, %c0_7] : memref<128x128xbf16, #tpu.memory_space<vmem>>, vector<128x128xbf16>
    %cst_8 = arith.constant dense<0.000000e+00> : vector<256x128xf32>
    %12 = tpu.matmul %10, %11, %cst_8 {dimension_numbers = #tpu.dot_dimension_numbers<[1], [0], [0], [1], [0, 0, 1, 1], [], []>} : vector<256x128xbf16>, vector<128x128xbf16>, vector<256x128xf32> -> vector<256x128xf32>
    %13 = arith.truncf %12 : vector<256x128xf32> to vector<256x128xbf16>
    %14 = vector.extract_strided_slice %0 {offsets = [1, 0], sizes = [1, 128], strides = [1, 1]} : vector<8x128xbf16> to vector<1x128xbf16>
    %15 = vector.broadcast %14 : vector<1x128xbf16> to vector<256x128xbf16>
    %16 = arith.addf %13, %15 : vector<256x128xbf16>
    %cst_9 = arith.constant 0.000000e+00 : bf16
    %17 = vector.broadcast %cst_9 : bf16 to vector<256x128xbf16>
    %18 = arith.maximumf %16, %17 : vector<256x128xbf16>
    %c0_10 = arith.constant 0 : index
    %c0_11 = arith.constant 0 : index
    %19 = vector.load %arg4[%c0_10, %c0_11] : memref<128x128xbf16, #tpu.memory_space<vmem>>, vector<128x128xbf16>
    %cst_12 = arith.constant dense<0.000000e+00> : vector<256x128xf32>
    %20 = tpu.matmul %18, %19, %cst_12 {dimension_numbers = #tpu.dot_dimension_numbers<[1], [0], [0], [1], [0, 0, 1, 1], [], []>} : vector<256x128xbf16>, vector<128x128xbf16>, vector<256x128xf32> -> vector<256x128xf32>
    %21 = arith.truncf %20 : vector<256x128xf32> to vector<256x128xbf16>
    %22 = vector.extract_strided_slice %0 {offsets = [2, 0], sizes = [1, 128], strides = [1, 1]} : vector<8x128xbf16> to vector<1x128xbf16>
    %23 = vector.broadcast %22 : vector<1x128xbf16> to vector<256x128xbf16>
    %24 = arith.addf %21, %23 : vector<256x128xbf16>
    %cst_13 = arith.constant 0.000000e+00 : bf16
    %25 = vector.broadcast %cst_13 : bf16 to vector<256x128xbf16>
    %26 = arith.maximumf %24, %25 : vector<256x128xbf16>
    %c0_14 = arith.constant 0 : index
    %c0_15 = arith.constant 0 : index
    %27 = vector.load %arg5[%c0_14, %c0_15] : memref<128x128xbf16, #tpu.memory_space<vmem>>, vector<128x128xbf16>
    %cst_16 = arith.constant dense<0.000000e+00> : vector<256x128xf32>
    %28 = tpu.matmul %26, %27, %cst_16 {dimension_numbers = #tpu.dot_dimension_numbers<[1], [0], [0], [1], [0, 0, 1, 1], [], []>} : vector<256x128xbf16>, vector<128x128xbf16>, vector<256x128xf32> -> vector<256x128xf32>
    %29 = arith.truncf %28 : vector<256x128xf32> to vector<256x128xbf16>
    %30 = vector.extract_strided_slice %0 {offsets = [3, 0], sizes = [1, 128], strides = [1, 1]} : vector<8x128xbf16> to vector<1x128xbf16>
    %31 = vector.broadcast %30 : vector<1x128xbf16> to vector<256x128xbf16>
    %32 = arith.addf %29, %31 : vector<256x128xbf16>
    %cst_17 = arith.constant 0.000000e+00 : bf16
    %33 = vector.broadcast %cst_17 : bf16 to vector<256x128xbf16>
    %34 = arith.maximumf %32, %33 : vector<256x128xbf16>
    %c0_18 = arith.constant 0 : index
    %c0_19 = arith.constant 0 : index
    %35 = vector.load %arg6[%c0_18, %c0_19] : memref<128x128xbf16, #tpu.memory_space<vmem>>, vector<128x128xbf16>
    %cst_20 = arith.constant dense<0.000000e+00> : vector<256x128xf32>
    %36 = tpu.matmul %34, %35, %cst_20 {dimension_numbers = #tpu.dot_dimension_numbers<[1], [0], [0], [1], [0, 0, 1, 1], [], []>} : vector<256x128xbf16>, vector<128x128xbf16>, vector<256x128xf32> -> vector<256x128xf32>
    %c0_21 = arith.constant 0 : index
    %c0_22 = arith.constant 0 : index
    %37 = vector.load %arg8[%c0_21, %c0_22] : memref<1x128xf32, #tpu.memory_space<vmem>>, vector<1x128xf32>
    %38 = vector.broadcast %37 : vector<1x128xf32> to vector<256x128xf32>
    %39 = arith.addf %36, %38 : vector<256x128xf32>
    %c0_23 = arith.constant 0 : index
    %c0_24 = arith.constant 0 : index
    %40 = vector.load %arg9[%c0_23, %c0_24] : memref<256x128xf32, #tpu.memory_space<vmem>>, vector<256x128xf32>
    tpu.vector_store %arg9[%c0_23, %c0_24], %39 {strides = array<i32>} : memref<256x128xf32, #tpu.memory_space<vmem>>, vector<256x128xf32>,
    return
  }
  func.func @transform_0(%arg0: i32) -> (i32, i32) {
    %c0_i32 = arith.constant 0 : i32
    %c0_i32_0 = arith.constant 0 : i32
    return %arg0, %c0_i32 : i32, i32
  }
  func.func @transform_1(%arg0: i32) -> (i32, i32) {
    %c0_i32 = arith.constant 0 : i32
    %c0_i32_0 = arith.constant 0 : i32
    %c0_i32_1 = arith.constant 0 : i32
    return %c0_i32, %c0_i32_0 : i32, i32
  }
  func.func @transform_2(%arg0: i32) -> (i32, i32) {
    %c0_i32 = arith.constant 0 : i32
    %c0_i32_0 = arith.constant 0 : i32
    %c0_i32_1 = arith.constant 0 : i32
    return %c0_i32, %c0_i32_0 : i32, i32
  }
  func.func @transform_3(%arg0: i32) -> (i32, i32) {
    %c0_i32 = arith.constant 0 : i32
    %c0_i32_0 = arith.constant 0 : i32
    %c0_i32_1 = arith.constant 0 : i32
    return %c0_i32, %c0_i32_0 : i32, i32
  }
  func.func @transform_4(%arg0: i32) -> (i32, i32) {
    %c0_i32 = arith.constant 0 : i32
    %c0_i32_0 = arith.constant 0 : i32
    %c0_i32_1 = arith.constant 0 : i32
    return %c0_i32, %c0_i32_0 : i32, i32
  }
  func.func @transform_5(%arg0: i32) -> (i32, i32) {
    %c0_i32 = arith.constant 0 : i32
    %c0_i32_0 = arith.constant 0 : i32
    %c0_i32_1 = arith.constant 0 : i32
    return %c0_i32, %c0_i32_0 : i32, i32
  }
  func.func @transform_6(%arg0: i32) -> (i32, i32) {
    %c0_i32 = arith.constant 0 : i32
    %c0_i32_0 = arith.constant 0 : i32
    %c0_i32_1 = arith.constant 0 : i32
    return %c0_i32, %c0_i32_0 : i32, i32
  }
  func.func @transform_7(%arg0: i32) -> (i32, i32) {
    %c0_i32 = arith.constant 0 : i32
    %c0_i32_0 = arith.constant 0 : i32
    %c0_i32_1 = arith.constant 0 : i32
    return %c0_i32, %c0_i32_0 : i32, i32
  }
  func.func @transform_8(%arg0: i32) -> (i32, i32) {
    %c0_i32 = arith.constant 0 : i32
    %c0_i32_0 = arith.constant 0 : i32
    return %arg0, %c0_i32 : i32, i32
  }
}

</mosaic_0001>

<llo_original>
// kernel: net_forward.1
$region0: #{net_forward.1}
  #allocation0 [shape = 'u32[]', space=smem, size = 0x4, offset = 0x4, fixed_abs, tag = 'smem constant byte address 0x4 - core index']
  #allocation1 [shape = 'u32[144,128]{1,0:T(1,128)}', space=vmem, size = 0x12000, scoped, tag = 'internal scratch']
  %s0 = inlined_call_operand.vmem [shape: f32[512,32], index: 0, kind: input, shape index: {}]
  %s1 = inlined_call_operand.vmem [shape: bf16[32,128], index: 1, kind: input, shape index: {}]
  %s2 = inlined_call_operand.vmem [shape: bf16[128,128], index: 2, kind: input, shape index: {}]
  %s3 = inlined_call_operand.vmem [shape: bf16[128,128], index: 3, kind: input, shape index: {}]
  %s4 = inlined_call_operand.vmem [shape: bf16[128,128], index: 4, kind: input, shape index: {}]
  %s5 = inlined_call_operand.vmem [shape: bf16[128,128], index: 5, kind: input, shape index: {}]
  %s6 = inlined_call_operand.vmem [shape: bf16[8,128], index: 6, kind: input, shape index: {}]
  %s7 = inlined_call_operand.vmem [shape: f32[1,128], index: 7, kind: input, shape index: {}]
  %s8 = inlined_call_operand.hbm [shape: f32[512,128], index: 8, kind: output, shape index: {}]
  %s9 = sld [smem:[#allocation0]]
  $region65: #{net_forward.1} parent=0
    _
  %s11 = ssub.s32 1, %s9
  %s12 = scalar_select 0, %s11, %s9
  $region1: #{net_forward.1} parent=0
    #allocation2 [shape = 'u8[262144]{0}', space=vmem, size = 0x40000, scoped, tag = 'output window, operand 0']
    #allocation3 [shape = 's32[2]{0}', space=sflag, size = 0x8, scoped, tag = 'scoped memory for net_forward.1']
    %13 = vsyncpa [#allocation3], 0
    %s14 = scalar_lea.sflag [#allocation3], 1
    %15 = vsyncpa %s14, 0
    loop: start=0, step=1, limit=4
    $region2: #{net_forward.1} parent=1 // loop_pre_header
      _
    $region3: #{net_forward.1} parent=1 // loop_header
      %s17 = sphi 0, %s21
      %p18 = scmp.ge.s32.totalorder %s17, 4
      %s27 = sphi 0, %s29
      %s30 = sphi 0, %s27
      %s31 = sphi 0, %s30
      %s47 = sphi 0, %s31
      %s51 = sphi 0, %s51
      %s53 = sphi 0, %s51
      %s54 = sphi 0, %s53
      %s68 = sphi 0, %s54
      %s72 = sphi 0, %s72
      %s74 = sphi 0, %s72
      %s75 = sphi 0, %s74
      %s89 = sphi 0, %s75
      %s93 = sphi 0, %s93
      %s95 = sphi 0, %s93
      %s96 = sphi 0, %s95
      %s110 = sphi 0, %s96
      %s114 = sphi 0, %s114
      %s116 = sphi 0, %s114
      %s117 = sphi 0, %s116
      %s131 = sphi 0, %s117
      %s135 = sphi 0, %s135
      %s137 = sphi 0, %s135
      %s138 = sphi 0, %s137
      %s152 = sphi 0, %s138
      %s156 = sphi 0, %s156
      %s158 = sphi 0, %s156
      %s159 = sphi 0, %s158
      %s173 = sphi 0, %s159
      %s177 = sphi 0, %s177
      %s179 = sphi 0, %s177
      %s180 = sphi 0, %s179
      %s194 = sphi 0, %s180
      %s200 = sphi 0, %s202
      %s203 = sphi 0, %s200
      %s204 = sphi 0, %s203
      %s220 = sphi 0, %s204
    $region4: #{net_forward.1} parent=1 // loop_header_branch
      %20 = sbr.rel (%p18) target = $region8
    $region5: #{net_forward.1} parent=1 // loop_body
      %s22 = ssub.s32 %s17, 1
      %s23 = ssub.s32 %s17, 2
      %s24 = sadd.s32 %s17, 1
      %s25 = ssub.s32 %s17, %s24
      %p26 = scmp.eq.s32.totalorder %s25, 0
      %s28 = sadd.s32 %s27, 1
      %s29 = scalar_select %p26, %s27, %s28
      %p32 = pneg %p26
      %p33 = scmp.eq.s32.totalorder %s17, 1
      %p34 = por %p32, %p33
      %p35 = scmp.ne.s32.totalorder %s27, %s30
      %p36 = scmp.eq.s32.totalorder %s17, 0
      %p37 = por %p35, %p36
      %p38 = scmp.ne.s32.totalorder %s27, %s30
      %p39 = scmp.eq.s32.totalorder %s22, 1
      %p40 = por %p38, %p39
      %p41 = scmp.ne.s32.totalorder %s30, %s31
      %p42 = scmp.eq.s32.totalorder %s22, 0
      %p43 = por %p41, %p42
      %p44 = scmp.ne.s32.totalorder %s30, %s31
      %p45 = scmp.eq.s32.totalorder %s23, 1
      %p46 = por %p44, %p45
      %p48 = scmp.ne.s32.totalorder %s31, %s47
      %p49 = scmp.eq.s32.totalorder %s23, 0
      %p50 = por %p48, %p49
      %s52 = sadd.s32 %s51, 1
      %p55 = scmp.eq.s32.totalorder %s17, 1
      %p56 = scmp.ne.s32.totalorder %s51, %s53
      %p57 = scmp.eq.s32.totalorder %s17, 0
      %p58 = por %p56, %p57
      %p59 = scmp.ne.s32.totalorder %s51, %s53
      %p60 = scmp.eq.s32.totalorder %s22, 1
      %p61 = por %p59, %p60
      %p62 = scmp.ne.s32.totalorder %s53, %s54
      %p63 = scmp.eq.s32.totalorder %s22, 0
      %p64 = por %p62, %p63
      %p65 = scmp.ne.s32.totalorder %s53, %s54
      %p66 = scmp.eq.s32.totalorder %s23, 1
      %p67 = por %p65, %p66
      %p69 = scmp.ne.s32.totalorder %s54, %s68
      %p70 = scmp.eq.s32.totalorder %s23, 0
      %p71 = por %p69, %p70
      %s73 = sadd.s32 %s72, 1
      %p76 = scmp.eq.s32.totalorder %s17, 1
      %p77 = scmp.ne.s32.totalorder %s72, %s74
      %p78 = scmp.eq.s32.totalorder %s17, 0
      %p79 = por %p77, %p78
      %p80 = scmp.ne.s32.totalorder %s72, %s74
      %p81 = scmp.eq.s32.totalorder %s22, 1
      %p82 = por %p80, %p81
      %p83 = scmp.ne.s32.totalorder %s74, %s75
      %p84 = scmp.eq.s32.totalorder %s22, 0
      %p85 = por %p83, %p84
      %p86 = scmp.ne.s32.totalorder %s74, %s75
      %p87 = scmp.eq.s32.totalorder %s23, 1
      %p88 = por %p86, %p87
      %p90 = scmp.ne.s32.totalorder %s75, %s89
      %p91 = scmp.eq.s32.totalorder %s23, 0
      %p92 = por %p90, %p91
      %s94 = sadd.s32 %s93, 1
      %p97 = scmp.eq.s32.totalorder %s17, 1
      %p98 = scmp.ne.s32.totalorder %s93, %s95
      %p99 = scmp.eq.s32.totalorder %s17, 0
      %p100 = por %p98, %p99
      %p101 = scmp.ne.s32.totalorder %s93, %s95
      %p102 = scmp.eq.s32.totalorder %s22, 1
      %p103 = por %p101, %p102
      %p104 = scmp.ne.s32.totalorder %s95, %s96
      %p105 = scmp.eq.s32.totalorder %s22, 0
      %p106 = por %p104, %p105
      %p107 = scmp.ne.s32.totalorder %s95, %s96
      %p108 = scmp.eq.s32.totalorder %s23, 1
      %p109 = por %p107, %p108
      %p111 = scmp.ne.s32.totalorder %s96, %s110
      %p112 = scmp.eq.s32.totalorder %s23, 0
      %p113 = por %p111, %p112
      %s115 = sadd.s32 %s114, 1
      %p118 = scmp.eq.s32.totalorder %s17, 1
      %p119 = scmp.ne.s32.totalorder %s114, %s116
      %p120 = scmp.eq.s32.totalorder %s17, 0
      %p121 = por %p119, %p120
      %p122 = scmp.ne.s32.totalorder %s114, %s116
      %p123 = scmp.eq.s32.totalorder %s22, 1
      %p124 = por %p122, %p123
      %p125 = scmp.ne.s32.totalorder %s116, %s117
      %p126 = scmp.eq.s32.totalorder %s22, 0
      %p127 = por %p125, %p126
      %p128 = scmp.ne.s32.totalorder %s116, %s117
      %p129 = scmp.eq.s32.totalorder %s23, 1
      %p130 = por %p128, %p129
      %p132 = scmp.ne.s32.totalorder %s117, %s131
      %p133 = scmp.eq.s32.totalorder %s23, 0
      %p134 = por %p132, %p133
      %s136 = sadd.s32 %s135, 1
      %p139 = scmp.eq.s32.totalorder %s17, 1
      %p140 = scmp.ne.s32.totalorder %s135, %s137
      %p141 = scmp.eq.s32.totalorder %s17, 0
      %p142 = por %p140, %p141
      %p143 = scmp.ne.s32.totalorder %s135, %s137
      %p144 = scmp.eq.s32.totalorder %s22, 1
      %p145 = por %p143, %p144
      %p146 = scmp.ne.s32.totalorder %s137, %s138
      %p147 = scmp.eq.s32.totalorder %s22, 0
      %p148 = por %p146, %p147
      %p149 = scmp.ne.s32.totalorder %s137, %s138
      %p150 = scmp.eq.s32.totalorder %s23, 1
      %p151 = por %p149, %p150
      %p153 = scmp.ne.s32.totalorder %s138, %s152
      %p154 = scmp.eq.s32.totalorder %s23, 0
      %p155 = por %p153, %p154
      %s157 = sadd.s32 %s156, 1
      %p160 = scmp.eq.s32.totalorder %s17, 1
      %p161 = scmp.ne.s32.totalorder %s156, %s158
      %p162 = scmp.eq.s32.totalorder %s17, 0
      %p163 = por %p161, %p162
      %p164 = scmp.ne.s32.totalorder %s156, %s158
      %p165 = scmp.eq.s32.totalorder %s22, 1
      %p166 = por %p164, %p165
      %p167 = scmp.ne.s32.totalorder %s158, %s159
      %p168 = scmp.eq.s32.totalorder %s22, 0
      %p169 = por %p167, %p168
      %p170 = scmp.ne.s32.totalorder %s158, %s159
      %p171 = scmp.eq.s32.totalorder %s23, 1
      %p172 = por %p170, %p171
      %p174 = scmp.ne.s32.totalorder %s159, %s173
      %p175 = scmp.eq.s32.totalorder %s23, 0
      %p176 = por %p174, %p175
      %s178 = sadd.s32 %s177, 1
      %p181 = scmp.eq.s32.totalorder %s17, 1
      %p182 = scmp.ne.s32.totalorder %s177, %s179
      %p183 = scmp.eq.s32.totalorder %s17, 0
      %p184 = por %p182, %p183
      %p185 = scmp.ne.s32.totalorder %s177, %s179
      %p186 = scmp.eq.s32.totalorder %s22, 1
      %p187 = por %p185, %p186
      %p188 = scmp.ne.s32.totalorder %s179, %s180
      %p189 = scmp.eq.s32.totalorder %s22, 0
      %p190 = por %p188, %p189
      %p191 = scmp.ne.s32.totalorder %s179, %s180
      %p192 = scmp.eq.s32.totalorder %s23, 1
      %p193 = por %p191, %p192
      %p195 = scmp.ne.s32.totalorder %s180, %s194
      %p196 = scmp.eq.s32.totalorder %s23, 0
      %p197 = por %p195, %p196
      %s198 = ssub.s32 %s17, %s24
      %p199 = scmp.eq.s32.totalorder %s198, 0
      %s201 = sadd.s32 %s200, 1
      %s202 = scalar_select %p199, %s200, %s201
      %p205 = pneg %p199
      %p206 = scmp.eq.s32.totalorder %s17, 1
      %p207 = por %p205, %p206
      %p208 = scmp.ne.s32.totalorder %s200, %s203
      %p209 = scmp.eq.s32.totalorder %s17, 0
      %p210 = por %p208, %p209
      %p211 = scmp.ne.s32.totalorder %s200, %s203
      %p212 = scmp.eq.s32.totalorder %s22, 1
      %p213 = por %p211, %p212
      %p214 = scmp.ne.s32.totalorder %s203, %s204
      %p215 = scmp.eq.s32.totalorder %s22, 0
      %p216 = por %p214, %p215
      %p217 = scmp.ne.s32.totalorder %s203, %s204
      %p218 = scmp.eq.s32.totalorder %s23, 1
      %p219 = por %p217, %p218
      %p221 = scmp.ne.s32.totalorder %s204, %s220
      %p222 = scmp.eq.s32.totalorder %s23, 0
      %p223 = por %p221, %p222
      %p224 = scmp.le.s32.totalorder 1, %s17
      %p225 = scmp.lt.s32.totalorder %s17, 3
      %p226 = pnand %p224, %p225
      %p227 = pneg %p226
      // Predicated region
      $region9: #{net_forward.1} parent=5 // pred_check
        _
      $region10: #{net_forward.1} parent=5 // pred_check_branch
        %229 = sbr.rel (%p226) target = $region12
      $region11: #{net_forward.1} parent=5 // pred_region
        %s230 = ssub.s32 %s17, 1
        // Predicated region
        $region13: #{net_forward.1} parent=11 // pred_check
          %p231 = pneg %p64
        $region14: #{net_forward.1} parent=11 // pred_check_branch
          %233 = sbr.rel (%p231) target = $region16
        $region15: #{net_forward.1} parent=11 // pred_region
          _
        $region16: #{net_forward.1} parent=11 // pred_fallthru
          _
        // Predicated region
        $region17: #{net_forward.1} parent=11 // pred_check
          %p234 = pneg %p85
        $region18: #{net_forward.1} parent=11 // pred_check_branch
          %236 = sbr.rel (%p234) target = $region20
        $region19: #{net_forward.1} parent=11 // pred_region
          _
        $region20: #{net_forward.1} parent=11 // pred_fallthru
          _
        // Predicated region
        $region21: #{net_forward.1} parent=11 // pred_check
          %p237 = pneg %p106
        $region22: #{net_forward.1} parent=11 // pred_check_branch
          %239 = sbr.rel (%p237) target = $region24
        $region23: #{net_forward.1} parent=11 // pred_region
          _
        $region24: #{net_forward.1} parent=11 // pred_fallthru
          _
        // Predicated region
        $region25: #{net_forward.1} parent=11 // pred_check
          %p240 = pneg %p127
        $region26: #{net_forward.1} parent=11 // pred_check_branch
          %242 = sbr.rel (%p240) target = $region28
        $region27: #{net_forward.1} parent=11 // pred_region
          _
        $region28: #{net_forward.1} parent=11 // pred_fallthru
          _
        // Predicated region
        $region29: #{net_forward.1} parent=11 // pred_check
          %p243 = pneg %p148
        $region30: #{net_forward.1} parent=11 // pred_check_branch
          %245 = sbr.rel (%p243) target = $region32
        $region31: #{net_forward.1} parent=11 // pred_region
          _
        $region32: #{net_forward.1} parent=11 // pred_fallthru
          _
        // Predicated region
        $region33: #{net_forward.1} parent=11 // pred_check
          %p246 = pneg %p169
        $region34: #{net_forward.1} parent=11 // pred_check_branch
          %248 = sbr.rel (%p246) target = $region36
        $region35: #{net_forward.1} parent=11 // pred_region
          _
        $region36: #{net_forward.1} parent=11 // pred_fallthru
          _
        // Predicated region
        $region37: #{net_forward.1} parent=11 // pred_check
          %p249 = pneg %p190
        $region38: #{net_forward.1} parent=11 // pred_check_branch
          %251 = sbr.rel (%p249) target = $region40
        $region39: #{net_forward.1} parent=11 // pred_region
          _
        $region40: #{net_forward.1} parent=11 // pred_fallthru
          _
      $region12: #{net_forward.1} parent=5 // pred_fallthru
        _
      %p252 = scmp.lt.s32.totalorder %s17, 2
      // Predicated region
      $region41: #{net_forward.1} parent=5 // pred_check
        %p253 = pneg %p252
      $region42: #{net_forward.1} parent=5 // pred_check_branch
        %255 = sbr.rel (%p253) target = $region44
      $region43: #{net_forward.1} parent=5 // pred_region
        // Predicated region
        $region45: #{net_forward.1} parent=43 // pred_check
          %p256 = pneg %p37
        $region46: #{net_forward.1} parent=43 // pred_check_branch
          %258 = sbr.rel (%p256) target = $region48
        $region47: #{net_forward.1} parent=43 // pred_region
          %s259 = smul.u32 32, %s17
          %p260 = scmp.lt.s32.totalorder %s259, 63
          %s261 = scalar_select %p260, %s259, 63
          %s262 = smul.addr %s261, 8
          %s263 = scalar_lea.vmem %s0, %s262
          %s264 = smul.u32 32, %s17
        $region48: #{net_forward.1} parent=43 // pred_fallthru
          _
      $region44: #{net_forward.1} parent=5 // pred_fallthru
        _
      %p265 = scmp.le.s32.totalorder 1, %s17
      %p266 = scmp.lt.s32.totalorder %s17, 3
      %p267 = pnand %p265, %p266
      %p268 = pneg %p267
      // Predicated region
      $region49: #{net_forward.1} parent=5 // pred_check
        _
      $region50: #{net_forward.1} parent=5 // pred_check_branch
        %270 = sbr.rel (%p267) target = $region52
      $region51: #{net_forward.1} parent=5 // pred_region
        %s271 = ssub.s32 %s17, 1
        %s272 = smul.u32 32, %s22
        %p273 = scmp.lt.s32.totalorder %s272, 63
        %s274 = scalar_select %p273, %s272, 63
        %s275 = smul.addr %s274, 8
        %s276 = scalar_lea.vmem %s0, %s275
        %p277 = pneg %p43
        %p278 = pneg %p40
        %p279 = pneg %p64
        %p280 = pneg %p61
        %p281 = pneg %p85
        %p282 = pneg %p82
        %p283 = pneg %p106
        %p284 = pneg %p103
        %p285 = pneg %p127
        %p286 = pneg %p124
        %p287 = pneg %p148
        %p288 = pneg %p145
        %p289 = pneg %p169
        %p290 = pneg %p166
        %p291 = pneg %p190
        %p292 = pneg %p187
        %p293 = pneg %p216
        %p294 = pneg %p213
        %s295 = sand.u32 %s203, 1
        %s296 = scalar_lea.sflag [#allocation3], %s295
        %s297 = sand.u32 %s203, 1
        %s298 = smul.addr %s297, 256
        %s299 = scalar_lea.vmem [#allocation2], %s298
        %s300 = smul.u32 32, %s22
        %p301 = scmp.lt.s32.totalorder %s300, 63
        %s302 = scalar_select %p301, %s300, 63
        %s303 = smul.addr %s302, 8
        %s304 = scalar_lea.vmem %s0, %s303
        %s305 = smul.u32 32, %s22
        %s306 = smul.u32 32, %s22
        %v308 = vld [vmem:[%s6] sm:$0xf]
        %v309 = vld [vmem:[%s304] sm:$0xff]
        %v310 = vld [vmem:[%s304 + $0x8] sm:$0xff]
        %v311 = vld [vmem:[%s304 + $0x10] sm:$0xff]
        %v312 = vld [vmem:[%s304 + $0x18] sm:$0xff]
        %v313 = vld [vmem:[%s304 + $0x20] sm:$0xff]
        %v314 = vld [vmem:[%s304 + $0x28] sm:$0xff]
        %v315 = vld [vmem:[%s304 + $0x30] sm:$0xff]
        %v316 = vld [vmem:[%s304 + $0x38] sm:$0xff]
        %v317 = vld [vmem:[%s304 + $0x40] sm:$0xff]
        %v318 = vld [vmem:[%s304 + $0x48] sm:$0xff]
        %v319 = vld [vmem:[%s304 + $0x50] sm:$0xff]
        %v320 = vld [vmem:[%s304 + $0x58] sm:$0xff]
        %v321 = vld [vmem:[%s304 + $0x60] sm:$0xff]
        %v322 = vld [vmem:[%s304 + $0x68] sm:$0xff]
        %v323 = vld [vmem:[%s304 + $0x70] sm:$0xff]
        %v324 = vld [vmem:[%s304 + $0x78] sm:$0xff]
        %v325 = vld [vmem:[%s304 + $0x80] sm:$0xff]
        %v326 = vld [vmem:[%s304 + $0x88] sm:$0xff]
        %v327 = vld [vmem:[%s304 + $0x90] sm:$0xff]
        %v328 = vld [vmem:[%s304 + $0x98] sm:$0xff]
        %v329 = vld [vmem:[%s304 + $0xa0] sm:$0xff]
        %v330 = vld [vmem:[%s304 + $0xa8] sm:$0xff]
        %v331 = vld [vmem:[%s304 + $0xb0] sm:$0xff]
        %v332 = vld [vmem:[%s304 + $0xb8] sm:$0xff]
        %v333 = vld [vmem:[%s304 + $0xc0] sm:$0xff]
        %v334 = vld [vmem:[%s304 + $0xc8] sm:$0xff]
        %v335 = vld [vmem:[%s304 + $0xd0] sm:$0xff]
        %v336 = vld [vmem:[%s304 + $0xd8] sm:$0xff]
        %v337 = vld [vmem:[%s304 + $0xe0] sm:$0xff]
        %v338 = vld [vmem:[%s304 + $0xe8] sm:$0xff]
        %v339 = vld [vmem:[%s304 + $0xf0] sm:$0xff]
        %v340 = vld [vmem:[%s304 + $0xf8] sm:$0xff]
        %v341 = vpack.c.bf16 %v310, %v309
        %v342 = vpack.c.bf16 %v312, %v311
        %v343 = vpack.c.bf16 %v314, %v313
        %v344 = vpack.c.bf16 %v316, %v315
        %v345 = vpack.c.bf16 %v318, %v317
        %v346 = vpack.c.bf16 %v320, %v319
        %v347 = vpack.c.bf16 %v322, %v321
        %v348 = vpack.c.bf16 %v324, %v323
        %v349 = vpack.c.bf16 %v326, %v325
        %v350 = vpack.c.bf16 %v328, %v327
        %v351 = vpack.c.bf16 %v330, %v329
        %v352 = vpack.c.bf16 %v332, %v331
        %v353 = vpack.c.bf16 %v334, %v333
        %v354 = vpack.c.bf16 %v336, %v335
        %v355 = vpack.c.bf16 %v338, %v337
        %v356 = vpack.c.bf16 %v340, %v339
        %v357 = vld [vmem:[%s1] sm:$0xf]
        %v358 = vld [vmem:[%s1 + $0x4] sm:$0xf]
        %v359 = vld [vmem:[%s1 + $0x8] sm:$0xf]
        %v360 = vld [vmem:[%s1 + $0xc] sm:$0xf]
        %v365 = vunpack.c.l.b16 %v357
        %v366 = vunpack.c.l.b16 %v358
        %v367 = vunpack.c.l.b16 %v359
        %v368 = vunpack.c.l.b16 %v360
        %v369 = vpack.c.b16 %v366, %v365
        %v370 = vpack.c.b16 %v368, %v367
        %vm373 = vcmask 261120
        %v375 = vsel %vm373, %v341, 0
        %v378 = vsel %vm373, %v342, 0
        %v381 = vsel %vm373, %v343, 0
        %v384 = vsel %vm373, %v344, 0
        %v387 = vsel %vm373, %v345, 0
        %v390 = vsel %vm373, %v346, 0
        %v393 = vsel %vm373, %v347, 0
        %v396 = vsel %vm373, %v348, 0
        %v399 = vsel %vm373, %v349, 0
        %v402 = vsel %vm373, %v350, 0
        %v405 = vsel %vm373, %v351, 0
        %v408 = vsel %vm373, %v352, 0
        %v411 = vsel %vm373, %v353, 0
        %v414 = vsel %vm373, %v354, 0
        %v417 = vsel %vm373, %v355, 0
        %v420 = vsel %vm373, %v356, 0
        %422 = vmatprep.subr.bf16.mxu0 0
        %423 = vmatpush1.bf16.msra.mxu0 %v369
        %424 = vmatprep.subr.bf16.mxu0 0
        %425 = vmatpush1.bf16.msra.mxu0 %v370
        %426 = vmatprep.subr.bf16.mxu0 0
        %427 = vmatpush1.bf16.msra.mxu0 0
        %428 = vmatprep.subr.bf16.mxu0 0
        %429 = vmatpush1.bf16.msra.mxu0 0
        %430 = vmatprep.subr.bf16.mxu0 0
        %431 = vmatpush1.bf16.msra.mxu0 0
        %432 = vmatprep.subr.bf16.mxu0 0
        %433 = vmatpush1.bf16.msra.mxu0 0
        %434 = vmatprep.subr.bf16.mxu0 0
        %435 = vmatpush1.bf16.msra.mxu0 0
        %436 = vmatprep.subr.bf16.mxu0 0
        %437 = vmatpush1.bf16.msra.mxu0 0
        %438 = vmatprep.subr.bf16.mxu0 0
        %439 = vmatpush1.bf16.msra.mxu0 0
        %440 = vmatprep.subr.bf16.mxu0 0
        %441 = vmatpush1.bf16.msra.mxu0 0
        %442 = vmatprep.subr.bf16.mxu0 0
        %443 = vmatpush1.bf16.msra.mxu0 0
        %444 = vmatprep.subr.bf16.mxu0 0
        %445 = vmatpush1.bf16.msra.mxu0 0
        %446 = vmatprep.subr.bf16.mxu0 0
        %447 = vmatpush1.bf16.msra.mxu0 0
        %448 = vmatprep.subr.bf16.mxu0 0
        %449 = vmatpush1.bf16.msra.mxu0 0
        %450 = vmatprep.subr.bf16.mxu0 0
        %451 = vmatpush1.bf16.msra.mxu0 0
        %452 = vmatprep.subr.bf16.mxu0 0
        %453 = vmatpush1.bf16.msra.mxu0 0
        %454 = vmatprep.mubr.bf16.mxu0 0
        %455 = vmatmul.mubr.bf16.gmra.mrb[0].mxu0 %v375
        %v456 = vpop.f32.mrb[0].mxu0
        %v457 = vadd.f32 0.0, %v456
        %v458 = vpop.f32.mrb[0].mxu0
        %v459 = vpop.f32.mrb[0].mxu0
        %v460 = vadd.f32 0.0, %v459
        %v461 = vpop.f32.mrb[0].mxu0
        %462 = vmatprep.mubr.bf16.mxu0 0
        %463 = vmatmul.mubr.bf16.gmra.mrb[0].mxu0 %v378
        %v464 = vpop.f32.mrb[0].mxu0
        %v465 = vadd.f32 0.0, %v464
        %v466 = vpop.f32.mrb[0].mxu0
        %v467 = vpop.f32.mrb[0].mxu0
        %v468 = vadd.f32 0.0, %v467
        %v469 = vpop.f32.mrb[0].mxu0
        %470 = vmatprep.mubr.bf16.mxu0 0
        %471 = vmatmul.mubr.bf16.gmra.mrb[0].mxu0 %v381
        %v472 = vpop.f32.mrb[0].mxu0
        %v473 = vadd.f32 0.0, %v472
        %v474 = vpop.f32.mrb[0].mxu0
        %v475 = vpop.f32.mrb[0].mxu0
        %v476 = vadd.f32 0.0, %v475
        %v477 = vpop.f32.mrb[0].mxu0
        %478 = vmatprep.mubr.bf16.mxu0 0
        %479 = vmatmul.mubr.bf16.gmra.mrb[0].mxu0 %v384
        %v480 = vpop.f32.mrb[0].mxu0
        %v481 = vadd.f32 0.0, %v480
        %v482 = vpop.f32.mrb[0].mxu0
        %v483 = vpop.f32.mrb[0].mxu0
        %v484 = vadd.f32 0.0, %v483
        %v485 = vpop.f32.mrb[0].mxu0
        %486 = vmatprep.mubr.bf16.mxu0 0
        %487 = vmatmul.mubr.bf16.gmra.mrb[0].mxu0 %v387
        %v488 = vpop.f32.mrb[0].mxu0
        %v489 = vadd.f32 0.0, %v488
        %v490 = vpop.f32.mrb[0].mxu0
        %v491 = vpop.f32.mrb[0].mxu0
        %v492 = vadd.f32 0.0, %v491
        %v493 = vpop.f32.mrb[0].mxu0
        %494 = vmatprep.mubr.bf16.mxu0 0
        %495 = vmatmul.mubr.bf16.gmra.mrb[0].mxu0 %v390
        %v496 = vpop.f32.mrb[0].mxu0
        %v497 = vadd.f32 0.0, %v496
        %v498 = vpop.f32.mrb[0].mxu0
        %v499 = vpop.f32.mrb[0].mxu0
        %v500 = vadd.f32 0.0, %v499
        %v501 = vpop.f32.mrb[0].mxu0
        %502 = vmatprep.mubr.bf16.mxu0 0
        %503 = vmatmul.mubr.bf16.gmra.mrb[0].mxu0 %v393
        %v504 = vpop.f32.mrb[0].mxu0
        %v505 = vadd.f32 0.0, %v504
        %v506 = vpop.f32.mrb[0].mxu0
        %v507 = vpop.f32.mrb[0].mxu0
        %v508 = vadd.f32 0.0, %v507
        %v509 = vpop.f32.mrb[0].mxu0
        %510 = vmatprep.mubr.bf16.mxu0 0
        %511 = vmatmul.mubr.bf16.gmra.mrb[0].mxu0 %v396
        %v512 = vpop.f32.mrb[0].mxu0
        %v513 = vadd.f32 0.0, %v512
        %v514 = vpop.f32.mrb[0].mxu0
        %v515 = vpop.f32.mrb[0].mxu0
        %v516 = vadd.f32 0.0, %v515
        %v517 = vpop.f32.mrb[0].mxu0
        %518 = vmatprep.mubr.bf16.mxu0 0
        %519 = vmatmul.mubr.bf16.gmra.mrb[0].mxu0 %v399
        %v520 = vpop.f32.mrb[0].mxu0
        %v521 = vadd.f32 0.0, %v520
        %v522 = vpop.f32.mrb[0].mxu0
        %v523 = vpop.f32.mrb[0].mxu0
        %v524 = vadd.f32 0.0, %v523
        %v525 = vpop.f32.mrb[0].mxu0
        %526 = vmatprep.mubr.bf16.mxu0 0
        %527 = vmatmul.mubr.bf16.gmra.mrb[0].mxu0 %v402
        %v528 = vpop.f32.mrb[0].mxu0
        %v529 = vadd.f32 0.0, %v528
        %v530 = vpop.f32.mrb[0].mxu0
        %v531 = vpop.f32.mrb[0].mxu0
        %v532 = vadd.f32 0.0, %v531
        %v533 = vpop.f32.mrb[0].mxu0
        %534 = vmatprep.mubr.bf16.mxu0 0
        %535 = vmatmul.mubr.bf16.gmra.mrb[0].mxu0 %v405
        %v536 = vpop.f32.mrb[0].mxu0
        %v537 = vadd.f32 0.0, %v536
        %v538 = vpop.f32.mrb[0].mxu0
        %v539 = vpop.f32.mrb[0].mxu0
        %v540 = vadd.f32 0.0, %v539
        %v541 = vpop.f32.mrb[0].mxu0
        %542 = vmatprep.mubr.bf16.mxu0 0
        %543 = vmatmul.mubr.bf16.gmra.mrb[0].mxu0 %v408
        %v544 = vpop.f32.mrb[0].mxu0
        %v545 = vadd.f32 0.0, %v544
        %v546 = vpop.f32.mrb[0].mxu0
        %v547 = vpop.f32.mrb[0].mxu0
        %v548 = vadd.f32 0.0, %v547
        %v549 = vpop.f32.mrb[0].mxu0
        %550 = vmatprep.mubr.bf16.mxu0 0
        %551 = vmatmul.mubr.bf16.gmra.mrb[0].mxu0 %v411
        %v552 = vpop.f32.mrb[0].mxu0
        %v553 = vadd.f32 0.0, %v552
        %v554 = vpop.f32.mrb[0].mxu0
        %v555 = vpop.f32.mrb[0].mxu0
        %v556 = vadd.f32 0.0, %v555
        %v557 = vpop.f32.mrb[0].mxu0
        %558 = vmatprep.mubr.bf16.mxu0 0
        %559 = vmatmul.mubr.bf16.gmra.mrb[0].mxu0 %v414
        %v560 = vpop.f32.mrb[0].mxu0
        %v561 = vadd.f32 0.0, %v560
        %v562 = vpop.f32.mrb[0].mxu0
        %v563 = vpop.f32.mrb[0].mxu0
        %v564 = vadd.f32 0.0, %v563
        %v565 = vpop.f32.mrb[0].mxu0
        %566 = vmatprep.mubr.bf16.mxu0 0
        %567 = vmatmul.mubr.bf16.gmra.mrb[0].mxu0 %v417
        %v568 = vpop.f32.mrb[0].mxu0
        %v569 = vadd.f32 0.0, %v568
        %v570 = vpop.f32.mrb[0].mxu0
        %v571 = vpop.f32.mrb[0].mxu0
        %v572 = vadd.f32 0.0, %v571
        %v573 = vpop.f32.mrb[0].mxu0
        %574 = vmatprep.mubr.bf16.mxu0 0
        %575 = vmatmul.mubr.bf16.gmra.mrb[0].mxu0 %v420
        %v576 = vpop.f32.mrb[0].mxu0
        %v577 = vadd.f32 0.0, %v576
        %v578 = vpop.f32.mrb[0].mxu0
        %v579 = vpop.f32.mrb[0].mxu0
        %v580 = vadd.f32 0.0, %v579
        %v581 = vpop.f32.mrb[0].mxu0
        %582 = vdwg.mxu0
        %v583 = vpack.c.bf16 %v460, %v457
        %v584 = vpack.c.bf16 %v468, %v465
        %v585 = vpack.c.bf16 %v476, %v473
        %v586 = vpack.c.bf16 %v484, %v481
        %v587 = vpack.c.bf16 %v492, %v489
        %v588 = vpack.c.bf16 %v500, %v497
        %v589 = vpack.c.bf16 %v508, %v505
        %v590 = vpack.c.bf16 %v516, %v513
        %v591 = vpack.c.bf16 %v524, %v521
        %v592 = vpack.c.bf16 %v532, %v529
        %v593 = vpack.c.bf16 %v540, %v537
        %v594 = vpack.c.bf16 %v548, %v545
        %v595 = vpack.c.bf16 %v556, %v553
        %v596 = vpack.c.bf16 %v564, %v561
        %v597 = vpack.c.bf16 %v572, %v569
        %v598 = vpack.c.bf16 %v580, %v577
        %v600 = vpack.i.b16 %v308, %v308
        %v602 = vlaneseq
        %v603 = vshrl.u32 %v602, 7
        %v604 = vsub.s32 0, %v603
        %v605 = vrot.slane %v600, %v604
        %v606 = vadd.bf16 %v583, %v605
        %v607 = vadd.bf16 %v584, %v605
        %v608 = vadd.bf16 %v585, %v605
        %v609 = vadd.bf16 %v586, %v605
        %v610 = vadd.bf16 %v587, %v605
        %v611 = vadd.bf16 %v588, %v605
        %v612 = vadd.bf16 %v589, %v605
        %v613 = vadd.bf16 %v590, %v605
        %v614 = vadd.bf16 %v591, %v605
        %v615 = vadd.bf16 %v592, %v605
        %v616 = vadd.bf16 %v593, %v605
        %v617 = vadd.bf16 %v594, %v605
        %v618 = vadd.bf16 %v595, %v605
        %v619 = vadd.bf16 %v596, %v605
        %v620 = vadd.bf16 %v597, %v605
        %v621 = vadd.bf16 %v598, %v605
        %v622 = vmax.bf16 %v606, 0
        %v623 = vmax.bf16 %v607, 0
        %v624 = vmax.bf16 %v608, 0
        %v625 = vmax.bf16 %v609, 0
        %v626 = vmax.bf16 %v610, 0
        %v627 = vmax.bf16 %v611, 0
        %v628 = vmax.bf16 %v612, 0
        %v629 = vmax.bf16 %v613, 0
        %v630 = vmax.bf16 %v614, 0
        %v631 = vmax.bf16 %v615, 0
        %v632 = vmax.bf16 %v616, 0
        %v633 = vmax.bf16 %v617, 0
        %v634 = vmax.bf16 %v618, 0
        %v635 = vmax.bf16 %v619, 0
        %v636 = vmax.bf16 %v620, 0
        %v637 = vmax.bf16 %v621, 0
        %v638 = vld [vmem:[%s2] sm:$0xf]
        %v639 = vld [vmem:[%s2 + $0x4] sm:$0xf]
        %v640 = vld [vmem:[%s2 + $0x8] sm:$0xf]
        %v641 = vld [vmem:[%s2 + $0xc] sm:$0xf]
        %v642 = vld [vmem:[%s2 + $0x10] sm:$0xf]
        %v643 = vld [vmem:[%s2 + $0x14] sm:$0xf]
        %v644 = vld [vmem:[%s2 + $0x18] sm:$0xf]
        %v645 = vld [vmem:[%s2 + $0x1c] sm:$0xf]
        %v646 = vld [vmem:[%s2 + $0x20] sm:$0xf]
        %v647 = vld [vmem:[%s2 + $0x24] sm:$0xf]
        %v648 = vld [vmem:[%s2 + $0x28] sm:$0xf]
        %v649 = vld [vmem:[%s2 + $0x2c] sm:$0xf]
        %v650 = vld [vmem:[%s2 + $0x30] sm:$0xf]
        %v651 = vld [vmem:[%s2 + $0x34] sm:$0xf]
        %v652 = vld [vmem:[%s2 + $0x38] sm:$0xf]
        %v653 = vld [vmem:[%s2 + $0x3c] sm:$0xf]
        %v670 = vunpack.c.l.b16 %v638
        %v671 = vunpack.c.l.b16 %v639
        %v672 = vunpack.c.l.b16 %v640
        %v673 = vunpack.c.l.b16 %v641
        %v674 = vunpack.c.l.b16 %v642
        %v675 = vunpack.c.l.b16 %v643
        %v676 = vunpack.c.l.b16 %v644
        %v677 = vunpack.c.l.b16 %v645
        %v678 = vunpack.c.l.b16 %v646
        %v679 = vunpack.c.l.b16 %v647
        %v680 = vunpack.c.l.b16 %v648
        %v681 = vunpack.c.l.b16 %v649
        %v682 = vunpack.c.l.b16 %v650
        %v683 = vunpack.c.l.b16 %v651
        %v684 = vunpack.c.l.b16 %v652
        %v685 = vunpack.c.l.b16 %v653
        %v686 = vpack.c.b16 %v671, %v670
        %v687 = vpack.c.b16 %v673, %v672
        %v688 = vpack.c.b16 %v675, %v674
        %v689 = vpack.c.b16 %v677, %v676
        %v690 = vpack.c.b16 %v679, %v678
        %v691 = vpack.c.b16 %v681, %v680
        %v692 = vpack.c.b16 %v683, %v682
        %v693 = vpack.c.b16 %v685, %v684
        %702 = vmatprep.subr.bf16.mxu0 0
        %703 = vmatpush1.bf16.msra.mxu0 %v686
        %704 = vmatprep.subr.bf16.mxu0 0
        %705 = vmatpush1.bf16.msra.mxu0 %v687
        %706 = vmatprep.subr.bf16.mxu0 0
        %707 = vmatpush1.bf16.msra.mxu0 %v688
        %708 = vmatprep.subr.bf16.mxu0 0
        %709 = vmatpush1.bf16.msra.mxu0 %v689
        %710 = vmatprep.subr.bf16.mxu0 0
        %711 = vmatpush1.bf16.msra.mxu0 %v690
        %712 = vmatprep.subr.bf16.mxu0 0
        %713 = vmatpush1.bf16.msra.mxu0 %v691
        %714 = vmatprep.subr.bf16.mxu0 0
        %715 = vmatpush1.bf16.msra.mxu0 %v692
        %716 = vmatprep.subr.bf16.mxu0 0
        %717 = vmatpush1.bf16.msra.mxu0 %v693
        %718 = vmatprep.subr.bf16.mxu0 0
        %719 = vmatpush1.bf16.msra.mxu0 0
        %720 = vmatprep.subr.bf16.mxu0 0
        %721 = vmatpush1.bf16.msra.mxu0 0
        %722 = vmatprep.subr.bf16.mxu0 0
        %723 = vmatpush1.bf16.msra.mxu0 0
        %724 = vmatprep.subr.bf16.mxu0 0
        %725 = vmatpush1.bf16.msra.mxu0 0
        %726 = vmatprep.subr.bf16.mxu0 0
        %727 = vmatpush1.bf16.msra.mxu0 0
        %728 = vmatprep.subr.bf16.mxu0 0
        %729 = vmatpush1.bf16.msra.mxu0 0
        %730 = vmatprep.subr.bf16.mxu0 0
        %731 = vmatpush1.bf16.msra.mxu0 0
        %732 = vmatprep.subr.bf16.mxu0 0
        %733 = vmatpush1.bf16.msra.mxu0 0
        %734 = vmatprep.mubr.bf16.mxu0 0
        %735 = vmatmul.mubr.bf16.gmra.mrb[0].mxu0 %v622
        %v736 = vpop.f32.mrb[0].mxu0
        %v737 = vadd.f32 0.0, %v736
        %v738 = vpop.f32.mrb[0].mxu0
        %v739 = vpop.f32.mrb[0].mxu0
        %v740 = vadd.f32 0.0, %v739
        %v741 = vpop.f32.mrb[0].mxu0
        %742 = vmatprep.mubr.bf16.mxu0 0
        %743 = vmatmul.mubr.bf16.gmra.mrb[0].mxu0 %v623
        %v744 = vpop.f32.mrb[0].mxu0
        %v745 = vadd.f32 0.0, %v744
        %v746 = vpop.f32.mrb[0].mxu0
        %v747 = vpop.f32.mrb[0].mxu0
        %v748 = vadd.f32 0.0, %v747
        %v749 = vpop.f32.mrb[0].mxu0
        %750 = vmatprep.mubr.bf16.mxu0 0
        %751 = vmatmul.mubr.bf16.gmra.mrb[0].mxu0 %v624
        %v752 = vpop.f32.mrb[0].mxu0
        %v753 = vadd.f32 0.0, %v752
        %v754 = vpop.f32.mrb[0].mxu0
        %v755 = vpop.f32.mrb[0].mxu0
        %v756 = vadd.f32 0.0, %v755
        %v757 = vpop.f32.mrb[0].mxu0
        %758 = vmatprep.mubr.bf16.mxu0 0
        %759 = vmatmul.mubr.bf16.gmra.mrb[0].mxu0 %v625
        %v760 = vpop.f32.mrb[0].mxu0
        %v761 = vadd.f32 0.0, %v760
        %v762 = vpop.f32.mrb[0].mxu0
        %v763 = vpop.f32.mrb[0].mxu0
        %v764 = vadd.f32 0.0, %v763
        %v765 = vpop.f32.mrb[0].mxu0
        %766 = vmatprep.mubr.bf16.mxu0 0
        %767 = vmatmul.mubr.bf16.gmra.mrb[0].mxu0 %v626
        %v768 = vpop.f32.mrb[0].mxu0
        %v769 = vadd.f32 0.0, %v768
        %v770 = vpop.f32.mrb[0].mxu0
        %v771 = vpop.f32.mrb[0].mxu0
        %v772 = vadd.f32 0.0, %v771
        %v773 = vpop.f32.mrb[0].mxu0
        %774 = vmatprep.mubr.bf16.mxu0 0
        %775 = vmatmul.mubr.bf16.gmra.mrb[0].mxu0 %v627
        %v776 = vpop.f32.mrb[0].mxu0
        %v777 = vadd.f32 0.0, %v776
        %v778 = vpop.f32.mrb[0].mxu0
        %v779 = vpop.f32.mrb[0].mxu0
        %v780 = vadd.f32 0.0, %v779
        %v781 = vpop.f32.mrb[0].mxu0
        %782 = vmatprep.mubr.bf16.mxu0 0
        %783 = vmatmul.mubr.bf16.gmra.mrb[0].mxu0 %v628
        %v784 = vpop.f32.mrb[0].mxu0
        %v785 = vadd.f32 0.0, %v784
        %v786 = vpop.f32.mrb[0].mxu0
        %v787 = vpop.f32.mrb[0].mxu0
        %v788 = vadd.f32 0.0, %v787
        %v789 = vpop.f32.mrb[0].mxu0
        %790 = vmatprep.mubr.bf16.mxu0 0
        %791 = vmatmul.mubr.bf16.gmra.mrb[0].mxu0 %v629
        %v792 = vpop.f32.mrb[0].mxu0
        %v793 = vadd.f32 0.0, %v792
        %v794 = vpop.f32.mrb[0].mxu0
        %v795 = vpop.f32.mrb[0].mxu0
        %v796 = vadd.f32 0.0, %v795
        %v797 = vpop.f32.mrb[0].mxu0
        %798 = vmatprep.mubr.bf16.mxu0 0
        %799 = vmatmul.mubr.bf16.gmra.mrb[0].mxu0 %v630
        %v800 = vpop.f32.mrb[0].mxu0
        %v801 = vadd.f32 0.0, %v800
        %v802 = vpop.f32.mrb[0].mxu0
        %v803 = vpop.f32.mrb[0].mxu0
        %v804 = vadd.f32 0.0, %v803
        %v805 = vpop.f32.mrb[0].mxu0
        %806 = vmatprep.mubr.bf16.mxu0 0
        %807 = vmatmul.mubr.bf16.gmra.mrb[0].mxu0 %v631
        %v808 = vpop.f32.mrb[0].mxu0
        %v809 = vadd.f32 0.0, %v808
        %v810 = vpop.f32.mrb[0].mxu0
        %v811 = vpop.f32.mrb[0].mxu0
        %v812 = vadd.f32 0.0, %v811
        %v813 = vpop.f32.mrb[0].mxu0
        %814 = vmatprep.mubr.bf16.mxu0 0
        %815 = vmatmul.mubr.bf16.gmra.mrb[0].mxu0 %v632
        %v816 = vpop.f32.mrb[0].mxu0
        %v817 = vadd.f32 0.0, %v816
        %v818 = vpop.f32.mrb[0].mxu0
        %v819 = vpop.f32.mrb[0].mxu0
        %v820 = vadd.f32 0.0, %v819
        %v821 = vpop.f32.mrb[0].mxu0
        %822 = vmatprep.mubr.bf16.mxu0 0
        %823 = vmatmul.mubr.bf16.gmra.mrb[0].mxu0 %v633
        %v824 = vpop.f32.mrb[0].mxu0
        %v825 = vadd.f32 0.0, %v824
        %v826 = vpop.f32.mrb[0].mxu0
        %v827 = vpop.f32.mrb[0].mxu0
        %v828 = vadd.f32 0.0, %v827
        %v829 = vpop.f32.mrb[0].mxu0
        %830 = vmatprep.mubr.bf16.mxu0 0
        %831 = vmatmul.mubr.bf16.gmra.mrb[0].mxu0 %v634
        %v832 = vpop.f32.mrb[0].mxu0
        %v833 = vadd.f32 0.0, %v832
        %v834 = vpop.f32.mrb[0].mxu0
        %v835 = vpop.f32.mrb[0].mxu0
        %v836 = vadd.f32 0.0, %v835
        %v837 = vpop.f32.mrb[0].mxu0
        %838 = vmatprep.mubr.bf16.mxu0 0
        %839 = vmatmul.mubr.bf16.gmra.mrb[0].mxu0 %v635
        %v840 = vpop.f32.mrb[0].mxu0
        %v841 = vadd.f32 0.0, %v840
        %v842 = vpop.f32.mrb[0].mxu0
        %v843 = vpop.f32.mrb[0].mxu0
        %v844 = vadd.f32 0.0, %v843
        %v845 = vpop.f32.mrb[0].mxu0
        %846 = vmatprep.mubr.bf16.mxu0 0
        %847 = vmatmul.mubr.bf16.gmra.mrb[0].mxu0 %v636
        %v848 = vpop.f32.mrb[0].mxu0
        %v849 = vadd.f32 0.0, %v848
        %v850 = vpop.f32.mrb[0].mxu0
        %v851 = vpop.f32.mrb[0].mxu0
        %v852 = vadd.f32 0.0, %v851
        %v853 = vpop.f32.mrb[0].mxu0
        %854 = vmatprep.mubr.bf16.mxu0 0
        %855 = vmatmul.mubr.bf16.gmra.mrb[0].mxu0 %v637
        %v856 = vpop.f32.mrb[0].mxu0
        %v857 = vadd.f32 0.0, %v856
        %v858 = vpop.f32.mrb[0].mxu0
        %v859 = vpop.f32.mrb[0].mxu0
        %v860 = vadd.f32 0.0, %v859
        %v861 = vpop.f32.mrb[0].mxu0
        %862 = vdwg.mxu0
        %v863 = vpack.c.bf16 %v740, %v737
        %v864 = vpack.c.bf16 %v748, %v745
        %v865 = vpack.c.bf16 %v756, %v753
        %v866 = vpack.c.bf16 %v764, %v761
        %v867 = vpack.c.bf16 %v772, %v769
        %v868 = vpack.c.bf16 %v780, %v777
        %v869 = vpack.c.bf16 %v788, %v785
        %v870 = vpack.c.bf16 %v796, %v793
        %v871 = vpack.c.bf16 %v804, %v801
        %v872 = vpack.c.bf16 %v812, %v809
        %v873 = vpack.c.bf16 %v820, %v817
        %v874 = vpack.c.bf16 %v828, %v825
        %v875 = vpack.c.bf16 %v836, %v833
        %v876 = vpack.c.bf16 %v844, %v841
        %v877 = vpack.c.bf16 %v852, %v849
        %v878 = vpack.c.bf16 %v860, %v857
        %v879 = vshrl.u32 %v308, 16
        %v880 = vpack.i.b16 %v879, %v879
        %v882 = vlaneseq
        %v883 = vshrl.u32 %v882, 7
        %v884 = vsub.s32 0, %v883
        %v885 = vrot.slane %v880, %v884
        %v886 = vadd.bf16 %v863, %v885
        %v887 = vadd.bf16 %v864, %v885
        %v888 = vadd.bf16 %v865, %v885
        %v889 = vadd.bf16 %v866, %v885
        %v890 = vadd.bf16 %v867, %v885
        %v891 = vadd.bf16 %v868, %v885
        %v892 = vadd.bf16 %v869, %v885
        %v893 = vadd.bf16 %v870, %v885
        %v894 = vadd.bf16 %v871, %v885
        %v895 = vadd.bf16 %v872, %v885
        %v896 = vadd.bf16 %v873, %v885
        %v897 = vadd.bf16 %v874, %v885
        %v898 = vadd.bf16 %v875, %v885
        %v899 = vadd.bf16 %v876, %v885
        %v900 = vadd.bf16 %v877, %v885
        %v901 = vadd.bf16 %v878, %v885
        %v902 = vmax.bf16 %v886, 0
        %v903 = vmax.bf16 %v887, 0
        %v904 = vmax.bf16 %v888, 0
        %v905 = vmax.bf16 %v889, 0
        %v906 = vmax.bf16 %v890, 0
        %v907 = vmax.bf16 %v891, 0
        %v908 = vmax.bf16 %v892, 0
        %v909 = vmax.bf16 %v893, 0
        %v910 = vmax.bf16 %v894, 0
        %v911 = vmax.bf16 %v895, 0
        %v912 = vmax.bf16 %v896, 0
        %v913 = vmax.bf16 %v897, 0
        %v914 = vmax.bf16 %v898, 0
        %v915 = vmax.bf16 %v899, 0
        %v916 = vmax.bf16 %v900, 0
        %v917 = vmax.bf16 %v901, 0
        %v918 = vld [vmem:[%s3] sm:$0xf]
        %v919 = vld [vmem:[%s3 + $0x4] sm:$0xf]
        %v920 = vld [vmem:[%s3 + $0x8] sm:$0xf]
        %v921 = vld [vmem:[%s3 + $0xc] sm:$0xf]
        %v922 = vld [vmem:[%s3 + $0x10] sm:$0xf]
        %v923 = vld [vmem:[%s3 + $0x14] sm:$0xf]
        %v924 = vld [vmem:[%s3 + $0x18] sm:$0xf]
        %v925 = vld [vmem:[%s3 + $0x1c] sm:$0xf]
        %v926 = vld [vmem:[%s3 + $0x20] sm:$0xf]
        %v927 = vld [vmem:[%s3 + $0x24] sm:$0xf]
        %v928 = vld [vmem:[%s3 + $0x28] sm:$0xf]
        %v929 = vld [vmem:[%s3 + $0x2c] sm:$0xf]
        %v930 = vld [vmem:[%s3 + $0x30] sm:$0xf]
        %v931 = vld [vmem:[%s3 + $0x34] sm:$0xf]
        %v932 = vld [vmem:[%s3 + $0x38] sm:$0xf]
        %v933 = vld [vmem:[%s3 + $0x3c] sm:$0xf]
        %v950 = vunpack.c.l.b16 %v918
        %v951 = vunpack.c.l.b16 %v919
        %v952 = vunpack.c.l.b16 %v920
        %v953 = vunpack.c.l.b16 %v921
        %v954 = vunpack.c.l.b16 %v922
        %v955 = vunpack.c.l.b16 %v923
        %v956 = vunpack.c.l.b16 %v924
        %v957 = vunpack.c.l.b16 %v925
        %v958 = vunpack.c.l.b16 %v926
        %v959 = vunpack.c.l.b16 %v927
        %v960 = vunpack.c.l.b16 %v928
        %v961 = vunpack.c.l.b16 %v929
        %v962 = vunpack.c.l.b16 %v930
        %v963 = vunpack.c.l.b16 %v931
        %v964 = vunpack.c.l.b16 %v932
        %v965 = vunpack.c.l.b16 %v933
        %v966 = vpack.c.b16 %v951, %v950
        %v967 = vpack.c.b16 %v953, %v952
        %v968 = vpack.c.b16 %v955, %v954
        %v969 = vpack.c.b16 %v957, %v956
        %v970 = vpack.c.b16 %v959, %v958
        %v971 = vpack.c.b16 %v961, %v960
        %v972 = vpack.c.b16 %v963, %v962
        %v973 = vpack.c.b16 %v965, %v964
        %982 = vmatprep.subr.bf16.mxu0 0
        %983 = vmatpush1.bf16.msra.mxu0 %v966
        %984 = vmatprep.subr.bf16.mxu0 0
        %985 = vmatpush1.bf16.msra.mxu0 %v967
        %986 = vmatprep.subr.bf16.mxu0 0
        %987 = vmatpush1.bf16.msra.mxu0 %v968
        %988 = vmatprep.subr.bf16.mxu0 0
        %989 = vmatpush1.bf16.msra.mxu0 %v969
        %990 = vmatprep.subr.bf16.mxu0 0
        %991 = vmatpush1.bf16.msra.mxu0 %v970
        %992 = vmatprep.subr.bf16.mxu0 0
        %993 = vmatpush1.bf16.msra.mxu0 %v971
        %994 = vmatprep.subr.bf16.mxu0 0
        %995 = vmatpush1.bf16.msra.mxu0 %v972
        %996 = vmatprep.subr.bf16.mxu0 0
        %997 = vmatpush1.bf16.msra.mxu0 %v973
        %998 = vmatprep.subr.bf16.mxu0 0
        %999 = vmatpush1.bf16.msra.mxu0 0
        %1000 = vmatprep.subr.bf16.mxu0 0
        %1001 = vmatpush1.bf16.msra.mxu0 0
        %1002 = vmatprep.subr.bf16.mxu0 0
        %1003 = vmatpush1.bf16.msra.mxu0 0
        %1004 = vmatprep.subr.bf16.mxu0 0
        %1005 = vmatpush1.bf16.msra.mxu0 0
        %1006 = vmatprep.subr.bf16.mxu0 0
        %1007 = vmatpush1.bf16.msra.mxu0 0
        %1008 = vmatprep.subr.bf16.mxu0 0
        %1009 = vmatpush1.bf16.msra.mxu0 0
        %1010 = vmatprep.subr.bf16.mxu0 0
        %1011 = vmatpush1.bf16.msra.mxu0 0
        %1012 = vmatprep.subr.bf16.mxu0 0
        %1013 = vmatpush1.bf16.msra.mxu0 0
        %1014 = vmatprep.mubr.bf16.mxu0 0
        %1015 = vmatmul.mubr.bf16.gmra.mrb[0].mxu0 %v902
        %v1016 = vpop.f32.mrb[0].mxu0
        %v1017 = vadd.f32 0.0, %v1016
        %v1018 = vpop.f32.mrb[0].mxu0
        %v1019 = vpop.f32.mrb[0].mxu0
        %v1020 = vadd.f32 0.0, %v1019
        %v1021 = vpop.f32.mrb[0].mxu0
        %1022 = vmatprep.mubr.bf16.mxu0 0
        %1023 = vmatmul.mubr.bf16.gmra.mrb[0].mxu0 %v903
        %v1024 = vpop.f32.mrb[0].mxu0
        %v1025 = vadd.f32 0.0, %v1024
        %v1026 = vpop.f32.mrb[0].mxu0
        %v1027 = vpop.f32.mrb[0].mxu0
        %v1028 = vadd.f32 0.0, %v1027
        %v1029 = vpop.f32.mrb[0].mxu0
        %1030 = vmatprep.mubr.bf16.mxu0 0
        %1031 = vmatmul.mubr.bf16.gmra.mrb[0].mxu0 %v904
        %v1032 = vpop.f32.mrb[0].mxu0
        %v1033 = vadd.f32 0.0, %v1032
        %v1034 = vpop.f32.mrb[0].mxu0
        %v1035 = vpop.f32.mrb[0].mxu0
        %v1036 = vadd.f32 0.0, %v1035
        %v1037 = vpop.f32.mrb[0].mxu0
        %1038 = vmatprep.mubr.bf16.mxu0 0
        %1039 = vmatmul.mubr.bf16.gmra.mrb[0].mxu0 %v905
        %v1040 = vpop.f32.mrb[0].mxu0
        %v1041 = vadd.f32 0.0, %v1040
        %v1042 = vpop.f32.mrb[0].mxu0
        %v1043 = vpop.f32.mrb[0].mxu0
        %v1044 = vadd.f32 0.0, %v1043
        %v1045 = vpop.f32.mrb[0].mxu0
        %1046 = vmatprep.mubr.bf16.mxu0 0
        %1047 = vmatmul.mubr.bf16.gmra.mrb[0].mxu0 %v906
        %v1048 = vpop.f32.mrb[0].mxu0
        %v1049 = vadd.f32 0.0, %v1048
        %v1050 = vpop.f32.mrb[0].mxu0
        %v1051 = vpop.f32.mrb[0].mxu0
        %v1052 = vadd.f32 0.0, %v1051
        %v1053 = vpop.f32.mrb[0].mxu0
        %1054 = vmatprep.mubr.bf16.mxu0 0
        %1055 = vmatmul.mubr.bf16.gmra.mrb[0].mxu0 %v907
        %v1056 = vpop.f32.mrb[0].mxu0
        %v1057 = vadd.f32 0.0, %v1056
        %v1058 = vpop.f32.mrb[0].mxu0
        %v1059 = vpop.f32.mrb[0].mxu0
        %v1060 = vadd.f32 0.0, %v1059
        %v1061 = vpop.f32.mrb[0].mxu0
        %1062 = vmatprep.mubr.bf16.mxu0 0
        %1063 = vmatmul.mubr.bf16.gmra.mrb[0].mxu0 %v908
        %v1064 = vpop.f32.mrb[0].mxu0
        %v1065 = vadd.f32 0.0, %v1064
        %v1066 = vpop.f32.mrb[0].mxu0
        %v1067 = vpop.f32.mrb[0].mxu0
        %v1068 = vadd.f32 0.0, %v1067
        %v1069 = vpop.f32.mrb[0].mxu0
        %1070 = vmatprep.mubr.bf16.mxu0 0
        %1071 = vmatmul.mubr.bf16.gmra.mrb[0].mxu0 %v909
        %v1072 = vpop.f32.mrb[0].mxu0
        %v1073 = vadd.f32 0.0, %v1072
        %v1074 = vpop.f32.mrb[0].mxu0
        %v1075 = vpop.f32.mrb[0].mxu0
        %v1076 = vadd.f32 0.0, %v1075
        %v1077 = vpop.f32.mrb[0].mxu0
        %1078 = vmatprep.mubr.bf16.mxu0 0
        %1079 = vmatmul.mubr.bf16.gmra.mrb[0].mxu0 %v910
        %v1080 = vpop.f32.mrb[0].mxu0
        %v1081 = vadd.f32 0.0, %v1080
        %v1082 = vpop.f32.mrb[0].mxu0
        %v1083 = vpop.f32.mrb[0].mxu0
        %v1084 = vadd.f32 0.0, %v1083
        %v1085 = vpop.f32.mrb[0].mxu0
        %1086 = vmatprep.mubr.bf16.mxu0 0
        %1087 = vmatmul.mubr.bf16.gmra.mrb[0].mxu0 %v911
        %v1088 = vpop.f32.mrb[0].mxu0
        %v1089 = vadd.f32 0.0, %v1088
        %v1090 = vpop.f32.mrb[0].mxu0
        %v1091 = vpop.f32.mrb[0].mxu0
        %v1092 = vadd.f32 0.0, %v1091
        %v1093 = vpop.f32.mrb[0].mxu0
        %1094 = vmatprep.mubr.bf16.mxu0 0
        %1095 = vmatmul.mubr.bf16.gmra.mrb[0].mxu0 %v912
        %v1096 = vpop.f32.mrb[0].mxu0
        %v1097 = vadd.f32 0.0, %v1096
        %v1098 = vpop.f32.mrb[0].mxu0
        %v1099 = vpop.f32.mrb[0].mxu0
        %v1100 = vadd.f32 0.0, %v1099
        %v1101 = vpop.f32.mrb[0].mxu0
        %1102 = vmatprep.mubr.bf16.mxu0 0
        %1103 = vmatmul.mubr.bf16.gmra.mrb[0].mxu0 %v913
        %v1104 = vpop.f32.mrb[0].mxu0
        %v1105 = vadd.f32 0.0, %v1104
        %v1106 = vpop.f32.mrb[0].mxu0
        %v1107 = vpop.f32.mrb[0].mxu0
        %v1108 = vadd.f32 0.0, %v1107
        %v1109 = vpop.f32.mrb[0].mxu0
        %1110 = vmatprep.mubr.bf16.mxu0 0
        %1111 = vmatmul.mubr.bf16.gmra.mrb[0].mxu0 %v914
        %v1112 = vpop.f32.mrb[0].mxu0
        %v1113 = vadd.f32 0.0, %v1112
        %v1114 = vpop.f32.mrb[0].mxu0
        %v1115 = vpop.f32.mrb[0].mxu0
        %v1116 = vadd.f32 0.0, %v1115
        %v1117 = vpop.f32.mrb[0].mxu0
        %1118 = vmatprep.mubr.bf16.mxu0 0
        %1119 = vmatmul.mubr.bf16.gmra.mrb[0].mxu0 %v915
        %v1120 = vpop.f32.mrb[0].mxu0
        %v1121 = vadd.f32 0.0, %v1120
        %v1122 = vpop.f32.mrb[0].mxu0
        %v1123 = vpop.f32.mrb[0].mxu0
        %v1124 = vadd.f32 0.0, %v1123
        %v1125 = vpop.f32.mrb[0].mxu0
        %1126 = vmatprep.mubr.bf16.mxu0 0
        %1127 = vmatmul.mubr.bf16.gmra.mrb[0].mxu0 %v916
        %v1128 = vpop.f32.mrb[0].mxu0
        %v1129 = vadd.f32 0.0, %v1128
        %v1130 = vpop.f32.mrb[0].mxu0
        %v1131 = vpop.f32.mrb[0].mxu0
        %v1132 = vadd.f32 0.0, %v1131
        %v1133 = vpop.f32.mrb[0].mxu0
        %1134 = vmatprep.mubr.bf16.mxu0 0
        %1135 = vmatmul.mubr.bf16.gmra.mrb[0].mxu0 %v917
        %v1136 = vpop.f32.mrb[0].mxu0
        %v1137 = vadd.f32 0.0, %v1136
        %v1138 = vpop.f32.mrb[0].mxu0
        %v1139 = vpop.f32.mrb[0].mxu0
        %v1140 = vadd.f32 0.0, %v1139
        %v1141 = vpop.f32.mrb[0].mxu0
        %1142 = vdwg.mxu0
        %v1143 = vpack.c.bf16 %v1020, %v1017
        %v1144 = vpack.c.bf16 %v1028, %v1025
        %v1145 = vpack.c.bf16 %v1036, %v1033
        %v1146 = vpack.c.bf16 %v1044, %v1041
        %v1147 = vpack.c.bf16 %v1052, %v1049
        %v1148 = vpack.c.bf16 %v1060, %v1057
        %v1149 = vpack.c.bf16 %v1068, %v1065
        %v1150 = vpack.c.bf16 %v1076, %v1073
        %v1151 = vpack.c.bf16 %v1084, %v1081
        %v1152 = vpack.c.bf16 %v1092, %v1089
        %v1153 = vpack.c.bf16 %v1100, %v1097
        %v1154 = vpack.c.bf16 %v1108, %v1105
        %v1155 = vpack.c.bf16 %v1116, %v1113
        %v1156 = vpack.c.bf16 %v1124, %v1121
        %v1157 = vpack.c.bf16 %v1132, %v1129
        %v1158 = vpack.c.bf16 %v1140, %v1137
        %v1159 = vlaneseq
        %v1160 = vshrl.u32 %v1159, 7
        %v1161 = vsub.s32 1, %v1160
        %v1162 = vrot.slane %v600, %v1161
        %v1163 = vadd.bf16 %v1143, %v1162
        %v1164 = vadd.bf16 %v1144, %v1162
        %v1165 = vadd.bf16 %v1145, %v1162
        %v1166 = vadd.bf16 %v1146, %v1162
        %v1167 = vadd.bf16 %v1147, %v1162
        %v1168 = vadd.bf16 %v1148, %v1162
        %v1169 = vadd.bf16 %v1149, %v1162
        %v1170 = vadd.bf16 %v1150, %v1162
        %v1171 = vadd.bf16 %v1151, %v1162
        %v1172 = vadd.bf16 %v1152, %v1162
        %v1173 = vadd.bf16 %v1153, %v1162
        %v1174 = vadd.bf16 %v1154, %v1162
        %v1175 = vadd.bf16 %v1155, %v1162
        %v1176 = vadd.bf16 %v1156, %v1162
        %v1177 = vadd.bf16 %v1157, %v1162
        %v1178 = vadd.bf16 %v1158, %v1162
        %v1179 = vmax.bf16 %v1163, 0
        %v1180 = vmax.bf16 %v1164, 0
        %v1181 = vmax.bf16 %v1165, 0
        %v1182 = vmax.bf16 %v1166, 0
        %v1183 = vmax.bf16 %v1167, 0
        %v1184 = vmax.bf16 %v1168, 0
        %v1185 = vmax.bf16 %v1169, 0
        %v1186 = vmax.bf16 %v1170, 0
        %v1187 = vmax.bf16 %v1171, 0
        %v1188 = vmax.bf16 %v1172, 0
        %v1189 = vmax.bf16 %v1173, 0
        %v1190 = vmax.bf16 %v1174, 0
        %v1191 = vmax.bf16 %v1175, 0
        %v1192 = vmax.bf16 %v1176, 0
        %v1193 = vmax.bf16 %v1177, 0
        %v1194 = vmax.bf16 %v1178, 0
        %v1195 = vld [vmem:[%s4] sm:$0xf]
        %v1196 = vld [vmem:[%s4 + $0x4] sm:$0xf]
        %v1197 = vld [vmem:[%s4 + $0x8] sm:$0xf]
        %v1198 = vld [vmem:[%s4 + $0xc] sm:$0xf]
        %v1199 = vld [vmem:[%s4 + $0x10] sm:$0xf]
        %v1200 = vld [vmem:[%s4 + $0x14] sm:$0xf]
        %v1201 = vld [vmem:[%s4 + $0x18] sm:$0xf]
        %v1202 = vld [vmem:[%s4 + $0x1c] sm:$0xf]
        %v1203 = vld [vmem:[%s4 + $0x20] sm:$0xf]
        %v1204 = vld [vmem:[%s4 + $0x24] sm:$0xf]
        %v1205 = vld [vmem:[%s4 + $0x28] sm:$0xf]
        %v1206 = vld [vmem:[%s4 + $0x2c] sm:$0xf]
        %v1207 = vld [vmem:[%s4 + $0x30] sm:$0xf]
        %v1208 = vld [vmem:[%s4 + $0x34] sm:$0xf]
        %v1209 = vld [vmem:[%s4 + $0x38] sm:$0xf]
        %v1210 = vld [vmem:[%s4 + $0x3c] sm:$0xf]
        %v1227 = vunpack.c.l.b16 %v1195
        %v1228 = vunpack.c.l.b16 %v1196
        %v1229 = vunpack.c.l.b16 %v1197
        %v1230 = vunpack.c.l.b16 %v1198
        %v1231 = vunpack.c.l.b16 %v1199
        %v1232 = vunpack.c.l.b16 %v1200
        %v1233 = vunpack.c.l.b16 %v1201
        %v1234 = vunpack.c.l.b16 %v1202
        %v1235 = vunpack.c.l.b16 %v1203
        %v1236 = vunpack.c.l.b16 %v1204
        %v1237 = vunpack.c.l.b16 %v1205
        %v1238 = vunpack.c.l.b16 %v1206
        %v1239 = vunpack.c.l.b16 %v1207
        %v1240 = vunpack.c.l.b16 %v1208
        %v1241 = vunpack.c.l.b16 %v1209
        %v1242 = vunpack.c.l.b16 %v1210
        %v1243 = vpack.c.b16 %v1228, %v1227
        %v1244 = vpack.c.b16 %v1230, %v1229
        %v1245 = vpack.c.b16 %v1232, %v1231
        %v1246 = vpack.c.b16 %v1234, %v1233
        %v1247 = vpack.c.b16 %v1236, %v1235
        %v1248 = vpack.c.b16 %v1238, %v1237
        %v1249 = vpack.c.b16 %v1240, %v1239
        %v1250 = vpack.c.b16 %v1242, %v1241
        %1259 = vmatprep.subr.bf16.mxu0 0
        %1260 = vmatpush1.bf16.msra.mxu0 %v1243
        %1261 = vmatprep.subr.bf16.mxu0 0
        %1262 = vmatpush1.bf16.msra.mxu0 %v1244
        %1263 = vmatprep.subr.bf16.mxu0 0
        %1264 = vmatpush1.bf16.msra.mxu0 %v1245
        %1265 = vmatprep.subr.bf16.mxu0 0
        %1266 = vmatpush1.bf16.msra.mxu0 %v1246
        %1267 = vmatprep.subr.bf16.mxu0 0
        %1268 = vmatpush1.bf16.msra.mxu0 %v1247
        %1269 = vmatprep.subr.bf16.mxu0 0
        %1270 = vmatpush1.bf16.msra.mxu0 %v1248
        %1271 = vmatprep.subr.bf16.mxu0 0
        %1272 = vmatpush1.bf16.msra.mxu0 %v1249
        %1273 = vmatprep.subr.bf16.mxu0 0
        %1274 = vmatpush1.bf16.msra.mxu0 %v1250
        %1275 = vmatprep.subr.bf16.mxu0 0
        %1276 = vmatpush1.bf16.msra.mxu0 0
        %1277 = vmatprep.subr.bf16.mxu0 0
        %1278 = vmatpush1.bf16.msra.mxu0 0
        %1279 = vmatprep.subr.bf16.mxu0 0
        %1280 = vmatpush1.bf16.msra.mxu0 0
        %1281 = vmatprep.subr.bf16.mxu0 0
        %1282 = vmatpush1.bf16.msra.mxu0 0
        %1283 = vmatprep.subr.bf16.mxu0 0
        %1284 = vmatpush1.bf16.msra.mxu0 0
        %1285 = vmatprep.subr.bf16.mxu0 0
        %1286 = vmatpush1.bf16.msra.mxu0 0
        %1287 = vmatprep.subr.bf16.mxu0 0
        %1288 = vmatpush1.bf16.msra.mxu0 0
        %1289 = vmatprep.subr.bf16.mxu0 0
        %1290 = vmatpush1.bf16.msra.mxu0 0
        %1291 = vmatprep.mubr.bf16.mxu0 0
        %1292 = vmatmul.mubr.bf16.gmra.mrb[0].mxu0 %v1179
        %v1293 = vpop.f32.mrb[0].mxu0
        %v1294 = vadd.f32 0.0, %v1293
        %v1295 = vpop.f32.mrb[0].mxu0
        %v1296 = vpop.f32.mrb[0].mxu0
        %v1297 = vadd.f32 0.0, %v1296
        %v1298 = vpop.f32.mrb[0].mxu0
        %1299 = vmatprep.mubr.bf16.mxu0 0
        %1300 = vmatmul.mubr.bf16.gmra.mrb[0].mxu0 %v1180
        %v1301 = vpop.f32.mrb[0].mxu0
        %v1302 = vadd.f32 0.0, %v1301
        %v1303 = vpop.f32.mrb[0].mxu0
        %v1304 = vpop.f32.mrb[0].mxu0
        %v1305 = vadd.f32 0.0, %v1304
        %v1306 = vpop.f32.mrb[0].mxu0
        %1307 = vmatprep.mubr.bf16.mxu0 0
        %1308 = vmatmul.mubr.bf16.gmra.mrb[0].mxu0 %v1181
        %v1309 = vpop.f32.mrb[0].mxu0
        %v1310 = vadd.f32 0.0, %v1309
        %v1311 = vpop.f32.mrb[0].mxu0
        %v1312 = vpop.f32.mrb[0].mxu0
        %v1313 = vadd.f32 0.0, %v1312
        %v1314 = vpop.f32.mrb[0].mxu0
        %1315 = vmatprep.mubr.bf16.mxu0 0
        %1316 = vmatmul.mubr.bf16.gmra.mrb[0].mxu0 %v1182
        %v1317 = vpop.f32.mrb[0].mxu0
        %v1318 = vadd.f32 0.0, %v1317
        %v1319 = vpop.f32.mrb[0].mxu0
        %v1320 = vpop.f32.mrb[0].mxu0
        %v1321 = vadd.f32 0.0, %v1320
        %v1322 = vpop.f32.mrb[0].mxu0
        %1323 = vmatprep.mubr.bf16.mxu0 0
        %1324 = vmatmul.mubr.bf16.gmra.mrb[0].mxu0 %v1183
        %v1325 = vpop.f32.mrb[0].mxu0
        %v1326 = vadd.f32 0.0, %v1325
        %v1327 = vpop.f32.mrb[0].mxu0
        %v1328 = vpop.f32.mrb[0].mxu0
        %v1329 = vadd.f32 0.0, %v1328
        %v1330 = vpop.f32.mrb[0].mxu0
        %1331 = vmatprep.mubr.bf16.mxu0 0
        %1332 = vmatmul.mubr.bf16.gmra.mrb[0].mxu0 %v1184
        %v1333 = vpop.f32.mrb[0].mxu0
        %v1334 = vadd.f32 0.0, %v1333
        %v1335 = vpop.f32.mrb[0].mxu0
        %v1336 = vpop.f32.mrb[0].mxu0
        %v1337 = vadd.f32 0.0, %v1336
        %v1338 = vpop.f32.mrb[0].mxu0
        %1339 = vmatprep.mubr.bf16.mxu0 0
        %1340 = vmatmul.mubr.bf16.gmra.mrb[0].mxu0 %v1185
        %v1341 = vpop.f32.mrb[0].mxu0
        %v1342 = vadd.f32 0.0, %v1341
        %v1343 = vpop.f32.mrb[0].mxu0
        %v1344 = vpop.f32.mrb[0].mxu0
        %v1345 = vadd.f32 0.0, %v1344
        %v1346 = vpop.f32.mrb[0].mxu0
        %1347 = vmatprep.mubr.bf16.mxu0 0
        %1348 = vmatmul.mubr.bf16.gmra.mrb[0].mxu0 %v1186
        %v1349 = vpop.f32.mrb[0].mxu0
        %v1350 = vadd.f32 0.0, %v1349
        %v1351 = vpop.f32.mrb[0].mxu0
        %v1352 = vpop.f32.mrb[0].mxu0
        %v1353 = vadd.f32 0.0, %v1352
        %v1354 = vpop.f32.mrb[0].mxu0
        %1355 = vmatprep.mubr.bf16.mxu0 0
        %1356 = vmatmul.mubr.bf16.gmra.mrb[0].mxu0 %v1187
        %v1357 = vpop.f32.mrb[0].mxu0
        %v1358 = vadd.f32 0.0, %v1357
        %v1359 = vpop.f32.mrb[0].mxu0
        %v1360 = vpop.f32.mrb[0].mxu0
        %v1361 = vadd.f32 0.0, %v1360
        %v1362 = vpop.f32.mrb[0].mxu0
        %1363 = vmatprep.mubr.bf16.mxu0 0
        %1364 = vmatmul.mubr.bf16.gmra.mrb[0].mxu0 %v1188
        %v1365 = vpop.f32.mrb[0].mxu0
        %v1366 = vadd.f32 0.0, %v1365
        %v1367 = vpop.f32.mrb[0].mxu0
        %v1368 = vpop.f32.mrb[0].mxu0
        %v1369 = vadd.f32 0.0, %v1368
        %v1370 = vpop.f32.mrb[0].mxu0
        %1371 = vmatprep.mubr.bf16.mxu0 0
        %1372 = vmatmul.mubr.bf16.gmra.mrb[0].mxu0 %v1189
        %v1373 = vpop.f32.mrb[0].mxu0
        %v1374 = vadd.f32 0.0, %v1373
        %v1375 = vpop.f32.mrb[0].mxu0
        %v1376 = vpop.f32.mrb[0].mxu0
        %v1377 = vadd.f32 0.0, %v1376
        %v1378 = vpop.f32.mrb[0].mxu0
        %1379 = vmatprep.mubr.bf16.mxu0 0
        %1380 = vmatmul.mubr.bf16.gmra.mrb[0].mxu0 %v1190
        %v1381 = vpop.f32.mrb[0].mxu0
        %v1382 = vadd.f32 0.0, %v1381
        %v1383 = vpop.f32.mrb[0].mxu0
        %v1384 = vpop.f32.mrb[0].mxu0
        %v1385 = vadd.f32 0.0, %v1384
        %v1386 = vpop.f32.mrb[0].mxu0
        %1387 = vmatprep.mubr.bf16.mxu0 0
        %1388 = vmatmul.mubr.bf16.gmra.mrb[0].mxu0 %v1191
        %v1389 = vpop.f32.mrb[0].mxu0
        %v1390 = vadd.f32 0.0, %v1389
        %v1391 = vpop.f32.mrb[0].mxu0
        %v1392 = vpop.f32.mrb[0].mxu0
        %v1393 = vadd.f32 0.0, %v1392
        %v1394 = vpop.f32.mrb[0].mxu0
        %1395 = vmatprep.mubr.bf16.mxu0 0
        %1396 = vmatmul.mubr.bf16.gmra.mrb[0].mxu0 %v1192
        %v1397 = vpop.f32.mrb[0].mxu0
        %v1398 = vadd.f32 0.0, %v1397
        %v1399 = vpop.f32.mrb[0].mxu0
        %v1400 = vpop.f32.mrb[0].mxu0
        %v1401 = vadd.f32 0.0, %v1400
        %v1402 = vpop.f32.mrb[0].mxu0
        %1403 = vmatprep.mubr.bf16.mxu0 0
        %1404 = vmatmul.mubr.bf16.gmra.mrb[0].mxu0 %v1193
        %v1405 = vpop.f32.mrb[0].mxu0
        %v1406 = vadd.f32 0.0, %v1405
        %v1407 = vpop.f32.mrb[0].mxu0
        %v1408 = vpop.f32.mrb[0].mxu0
        %v1409 = vadd.f32 0.0, %v1408
        %v1410 = vpop.f32.mrb[0].mxu0
        %1411 = vmatprep.mubr.bf16.mxu0 0
        %1412 = vmatmul.mubr.bf16.gmra.mrb[0].mxu0 %v1194
        %v1413 = vpop.f32.mrb[0].mxu0
        %v1414 = vadd.f32 0.0, %v1413
        %v1415 = vpop.f32.mrb[0].mxu0
        %v1416 = vpop.f32.mrb[0].mxu0
        %v1417 = vadd.f32 0.0, %v1416
        %v1418 = vpop.f32.mrb[0].mxu0
        %1419 = vdwg.mxu0
        %v1420 = vpack.c.bf16 %v1297, %v1294
        %v1421 = vpack.c.bf16 %v1305, %v1302
        %v1422 = vpack.c.bf16 %v1313, %v1310
        %v1423 = vpack.c.bf16 %v1321, %v1318
        %v1424 = vpack.c.bf16 %v1329, %v1326
        %v1425 = vpack.c.bf16 %v1337, %v1334
        %v1426 = vpack.c.bf16 %v1345, %v1342
        %v1427 = vpack.c.bf16 %v1353, %v1350
        %v1428 = vpack.c.bf16 %v1361, %v1358
        %v1429 = vpack.c.bf16 %v1369, %v1366
        %v1430 = vpack.c.bf16 %v1377, %v1374
        %v1431 = vpack.c.bf16 %v1385, %v1382
        %v1432 = vpack.c.bf16 %v1393, %v1390
        %v1433 = vpack.c.bf16 %v1401, %v1398
        %v1434 = vpack.c.bf16 %v1409, %v1406
        %v1435 = vpack.c.bf16 %v1417, %v1414
        %v1436 = vlaneseq
        %v1437 = vshrl.u32 %v1436, 7
        %v1438 = vsub.s32 1, %v1437
        %v1439 = vrot.slane %v880, %v1438
        %v1440 = vadd.bf16 %v1420, %v1439
        %v1441 = vadd.bf16 %v1421, %v1439
        %v1442 = vadd.bf16 %v1422, %v1439
        %v1443 = vadd.bf16 %v1423, %v1439
        %v1444 = vadd.bf16 %v1424, %v1439
        %v1445 = vadd.bf16 %v1425, %v1439
        %v1446 = vadd.bf16 %v1426, %v1439
        %v1447 = vadd.bf16 %v1427, %v1439
        %v1448 = vadd.bf16 %v1428, %v1439
        %v1449 = vadd.bf16 %v1429, %v1439
        %v1450 = vadd.bf16 %v1430, %v1439
        %v1451 = vadd.bf16 %v1431, %v1439
        %v1452 = vadd.bf16 %v1432, %v1439
        %v1453 = vadd.bf16 %v1433, %v1439
        %v1454 = vadd.bf16 %v1434, %v1439
        %v1455 = vadd.bf16 %v1435, %v1439
        %v1456 = vmax.bf16 %v1440, 0
        %v1457 = vmax.bf16 %v1441, 0
        %v1458 = vmax.bf16 %v1442, 0
        %v1459 = vmax.bf16 %v1443, 0
        %v1460 = vmax.bf16 %v1444, 0
        %v1461 = vmax.bf16 %v1445, 0
        %v1462 = vmax.bf16 %v1446, 0
        %v1463 = vmax.bf16 %v1447, 0
        %v1464 = vmax.bf16 %v1448, 0
        %v1465 = vmax.bf16 %v1449, 0
        %v1466 = vmax.bf16 %v1450, 0
        %v1467 = vmax.bf16 %v1451, 0
        %v1468 = vmax.bf16 %v1452, 0
        %v1469 = vmax.bf16 %v1453, 0
        %v1470 = vmax.bf16 %v1454, 0
        %v1471 = vmax.bf16 %v1455, 0
        %v1472 = vld [vmem:[%s5] sm:$0xf]
        %v1473 = vld [vmem:[%s5 + $0x4] sm:$0xf]
        %v1474 = vld [vmem:[%s5 + $0x8] sm:$0xf]
        %v1475 = vld [vmem:[%s5 + $0xc] sm:$0xf]
        %v1476 = vld [vmem:[%s5 + $0x10] sm:$0xf]
        %v1477 = vld [vmem:[%s5 + $0x14] sm:$0xf]
        %v1478 = vld [vmem:[%s5 + $0x18] sm:$0xf]
        %v1479 = vld [vmem:[%s5 + $0x1c] sm:$0xf]
        %v1480 = vld [vmem:[%s5 + $0x20] sm:$0xf]
        %v1481 = vld [vmem:[%s5 + $0x24] sm:$0xf]
        %v1482 = vld [vmem:[%s5 + $0x28] sm:$0xf]
        %v1483 = vld [vmem:[%s5 + $0x2c] sm:$0xf]
        %v1484 = vld [vmem:[%s5 + $0x30] sm:$0xf]
        %v1485 = vld [vmem:[%s5 + $0x34] sm:$0xf]
        %v1486 = vld [vmem:[%s5 + $0x38] sm:$0xf]
        %v1487 = vld [vmem:[%s5 + $0x3c] sm:$0xf]
        %v1488 = vld [vmem:[%s7] sm:$0x1]
        %v1490 = vlaneseq
        %v1491 = vshrl.u32 %v1490, 7
        %v1492 = vsub.s32 0, %v1491
        %v1493 = vrot.slane %v1488, %v1492
        %v1511 = vunpack.c.l.b16 %v1472
        %v1512 = vunpack.c.l.b16 %v1473
        %v1513 = vunpack.c.l.b16 %v1474
        %v1514 = vunpack.c.l.b16 %v1475
        %v1515 = vunpack.c.l.b16 %v1476
        %v1516 = vunpack.c.l.b16 %v1477
        %v1517 = vunpack.c.l.b16 %v1478
        %v1518 = vunpack.c.l.b16 %v1479
        %v1519 = vunpack.c.l.b16 %v1480
        %v1520 = vunpack.c.l.b16 %v1481
        %v1521 = vunpack.c.l.b16 %v1482
        %v1522 = vunpack.c.l.b16 %v1483
        %v1523 = vunpack.c.l.b16 %v1484
        %v1524 = vunpack.c.l.b16 %v1485
        %v1525 = vunpack.c.l.b16 %v1486
        %v1526 = vunpack.c.l.b16 %v1487
        %v1527 = vpack.c.b16 %v1512, %v1511
        %v1528 = vpack.c.b16 %v1514, %v1513
        %v1529 = vpack.c.b16 %v1516, %v1515
        %v1530 = vpack.c.b16 %v1518, %v1517
        %v1531 = vpack.c.b16 %v1520, %v1519
        %v1532 = vpack.c.b16 %v1522, %v1521
        %v1533 = vpack.c.b16 %v1524, %v1523
        %v1534 = vpack.c.b16 %v1526, %v1525
        %1543 = vmatprep.subr.bf16.mxu0 0
        %1544 = vmatpush1.bf16.msra.mxu0 %v1527
        %1545 = vmatprep.subr.bf16.mxu0 0
        %1546 = vmatpush1.bf16.msra.mxu0 %v1528
        %1547 = vmatprep.subr.bf16.mxu0 0
        %1548 = vmatpush1.bf16.msra.mxu0 %v1529
        %1549 = vmatprep.subr.bf16.mxu0 0
        %1550 = vmatpush1.bf16.msra.mxu0 %v1530
        %1551 = vmatprep.subr.bf16.mxu0 0
        %1552 = vmatpush1.bf16.msra.mxu0 %v1531
        %1553 = vmatprep.subr.bf16.mxu0 0
        %1554 = vmatpush1.bf16.msra.mxu0 %v1532
        %1555 = vmatprep.subr.bf16.mxu0 0
        %1556 = vmatpush1.bf16.msra.mxu0 %v1533
        %1557 = vmatprep.subr.bf16.mxu0 0
        %1558 = vmatpush1.bf16.msra.mxu0 %v1534
        %1559 = vmatprep.subr.bf16.mxu0 0
        %1560 = vmatpush1.bf16.msra.mxu0 0
        %1561 = vmatprep.subr.bf16.mxu0 0
        %1562 = vmatpush1.bf16.msra.mxu0 0
        %1563 = vmatprep.subr.bf16.mxu0 0
        %1564 = vmatpush1.bf16.msra.mxu0 0
        %1565 = vmatprep.subr.bf16.mxu0 0
        %1566 = vmatpush1.bf16.msra.mxu0 0
        %1567 = vmatprep.subr.bf16.mxu0 0
        %1568 = vmatpush1.bf16.msra.mxu0 0
        %1569 = vmatprep.subr.bf16.mxu0 0
        %1570 = vmatpush1.bf16.msra.mxu0 0
        %1571 = vmatprep.subr.bf16.mxu0 0
        %1572 = vmatpush1.bf16.msra.mxu0 0
        %1573 = vmatprep.subr.bf16.mxu0 0
        %1574 = vmatpush1.bf16.msra.mxu0 0
        %1575 = vmatprep.mubr.bf16.mxu0 0
        %1576 = vmatmul.mubr.bf16.gmra.mrb[0].mxu0 %v1456
        %v1577 = vpop.f32.mrb[0].mxu0
        %v1578 = vadd.f32 %v1493, %v1577
        %v1579 = vpop.f32.mrb[0].mxu0
        %v1580 = vpop.f32.mrb[0].mxu0
        %v1581 = vadd.f32 %v1493, %v1580
        %v1582 = vpop.f32.mrb[0].mxu0
        %1583 = vmatprep.mubr.bf16.mxu0 0
        %1584 = vmatmul.mubr.bf16.gmra.mrb[0].mxu0 %v1457
        %v1585 = vpop.f32.mrb[0].mxu0
        %v1586 = vadd.f32 %v1493, %v1585
        %v1587 = vpop.f32.mrb[0].mxu0
        %v1588 = vpop.f32.mrb[0].mxu0
        %v1589 = vadd.f32 %v1493, %v1588
        %v1590 = vpop.f32.mrb[0].mxu0
        %1591 = vmatprep.mubr.bf16.mxu0 0
        %1592 = vmatmul.mubr.bf16.gmra.mrb[0].mxu0 %v1458
        %v1593 = vpop.f32.mrb[0].mxu0
        %v1594 = vadd.f32 %v1493, %v1593
        %v1595 = vpop.f32.mrb[0].mxu0
        %v1596 = vpop.f32.mrb[0].mxu0
        %v1597 = vadd.f32 %v1493, %v1596
        %v1598 = vpop.f32.mrb[0].mxu0
        %1599 = vmatprep.mubr.bf16.mxu0 0
        %1600 = vmatmul.mubr.bf16.gmra.mrb[0].mxu0 %v1459
        %v1601 = vpop.f32.mrb[0].mxu0
        %v1602 = vadd.f32 %v1493, %v1601
        %v1603 = vpop.f32.mrb[0].mxu0
        %v1604 = vpop.f32.mrb[0].mxu0
        %v1605 = vadd.f32 %v1493, %v1604
        %v1606 = vpop.f32.mrb[0].mxu0
        %1607 = vmatprep.mubr.bf16.mxu0 0
        %1608 = vmatmul.mubr.bf16.gmra.mrb[0].mxu0 %v1460
        %v1609 = vpop.f32.mrb[0].mxu0
        %v1610 = vadd.f32 %v1493, %v1609
        %v1611 = vpop.f32.mrb[0].mxu0
        %v1612 = vpop.f32.mrb[0].mxu0
        %v1613 = vadd.f32 %v1493, %v1612
        %v1614 = vpop.f32.mrb[0].mxu0
        %1615 = vmatprep.mubr.bf16.mxu0 0
        %1616 = vmatmul.mubr.bf16.gmra.mrb[0].mxu0 %v1461
        %v1617 = vpop.f32.mrb[0].mxu0
        %v1618 = vadd.f32 %v1493, %v1617
        %v1619 = vpop.f32.mrb[0].mxu0
        %v1620 = vpop.f32.mrb[0].mxu0
        %v1621 = vadd.f32 %v1493, %v1620
        %v1622 = vpop.f32.mrb[0].mxu0
        %1623 = vmatprep.mubr.bf16.mxu0 0
        %1624 = vmatmul.mubr.bf16.gmra.mrb[0].mxu0 %v1462
        %v1625 = vpop.f32.mrb[0].mxu0
        %v1626 = vadd.f32 %v1493, %v1625
        %v1627 = vpop.f32.mrb[0].mxu0
        %v1628 = vpop.f32.mrb[0].mxu0
        %v1629 = vadd.f32 %v1493, %v1628
        %v1630 = vpop.f32.mrb[0].mxu0
        %1631 = vmatprep.mubr.bf16.mxu0 0
        %1632 = vmatmul.mubr.bf16.gmra.mrb[0].mxu0 %v1463
        %v1633 = vpop.f32.mrb[0].mxu0
        %v1634 = vadd.f32 %v1493, %v1633
        %v1635 = vpop.f32.mrb[0].mxu0
        %v1636 = vpop.f32.mrb[0].mxu0
        %v1637 = vadd.f32 %v1493, %v1636
        %v1638 = vpop.f32.mrb[0].mxu0
        %1639 = vmatprep.mubr.bf16.mxu0 0
        %1640 = vmatmul.mubr.bf16.gmra.mrb[0].mxu0 %v1464
        %v1641 = vpop.f32.mrb[0].mxu0
        %v1642 = vadd.f32 %v1493, %v1641
        %v1643 = vpop.f32.mrb[0].mxu0
        %v1644 = vpop.f32.mrb[0].mxu0
        %v1645 = vadd.f32 %v1493, %v1644
        %v1646 = vpop.f32.mrb[0].mxu0
        %1647 = vmatprep.mubr.bf16.mxu0 0
        %1648 = vmatmul.mubr.bf16.gmra.mrb[0].mxu0 %v1465
        %v1649 = vpop.f32.mrb[0].mxu0
        %v1650 = vadd.f32 %v1493, %v1649
        %v1651 = vpop.f32.mrb[0].mxu0
        %v1652 = vpop.f32.mrb[0].mxu0
        %v1653 = vadd.f32 %v1493, %v1652
        %v1654 = vpop.f32.mrb[0].mxu0
        %1655 = vmatprep.mubr.bf16.mxu0 0
        %1656 = vmatmul.mubr.bf16.gmra.mrb[0].mxu0 %v1466
        %v1657 = vpop.f32.mrb[0].mxu0
        %v1658 = vadd.f32 %v1493, %v1657
        %v1659 = vpop.f32.mrb[0].mxu0
        %v1660 = vpop.f32.mrb[0].mxu0
        %v1661 = vadd.f32 %v1493, %v1660
        %v1662 = vpop.f32.mrb[0].mxu0
        %1663 = vmatprep.mubr.bf16.mxu0 0
        %1664 = vmatmul.mubr.bf16.gmra.mrb[0].mxu0 %v1467
        %v1665 = vpop.f32.mrb[0].mxu0
        %v1666 = vadd.f32 %v1493, %v1665
        %v1667 = vpop.f32.mrb[0].mxu0
        %v1668 = vpop.f32.mrb[0].mxu0
        %v1669 = vadd.f32 %v1493, %v1668
        %v1670 = vpop.f32.mrb[0].mxu0
        %1671 = vmatprep.mubr.bf16.mxu0 0
        %1672 = vmatmul.mubr.bf16.gmra.mrb[0].mxu0 %v1468
        %v1673 = vpop.f32.mrb[0].mxu0
        %v1674 = vadd.f32 %v1493, %v1673
        %v1675 = vpop.f32.mrb[0].mxu0
        %v1676 = vpop.f32.mrb[0].mxu0
        %v1677 = vadd.f32 %v1493, %v1676
        %v1678 = vpop.f32.mrb[0].mxu0
        %1679 = vmatprep.mubr.bf16.mxu0 0
        %1680 = vmatmul.mubr.bf16.gmra.mrb[0].mxu0 %v1469
        %v1681 = vpop.f32.mrb[0].mxu0
        %v1682 = vadd.f32 %v1493, %v1681
        %v1683 = vpop.f32.mrb[0].mxu0
        %v1684 = vpop.f32.mrb[0].mxu0
        %v1685 = vadd.f32 %v1493, %v1684
        %v1686 = vpop.f32.mrb[0].mxu0
        %1687 = vmatprep.mubr.bf16.mxu0 0
        %1688 = vmatmul.mubr.bf16.gmra.mrb[0].mxu0 %v1470
        %v1689 = vpop.f32.mrb[0].mxu0
        %v1690 = vadd.f32 %v1493, %v1689
        %v1691 = vpop.f32.mrb[0].mxu0
        %v1692 = vpop.f32.mrb[0].mxu0
        %v1693 = vadd.f32 %v1493, %v1692
        %v1694 = vpop.f32.mrb[0].mxu0
        %1695 = vmatprep.mubr.bf16.mxu0 0
        %1696 = vmatmul.mubr.bf16.gmra.mrb[0].mxu0 %v1471
        %v1697 = vpop.f32.mrb[0].mxu0
        %v1698 = vadd.f32 %v1493, %v1697
        %v1699 = vpop.f32.mrb[0].mxu0
        %v1700 = vpop.f32.mrb[0].mxu0
        %v1701 = vadd.f32 %v1493, %v1700
        %v1702 = vpop.f32.mrb[0].mxu0
        %1703 = vdwg.mxu0
        %1704 = vst [vmem:[%s299] sm:$0xff] %v1578
        %1705 = vst [vmem:[%s299 + $0x8] sm:$0xff] %v1581
        %1706 = vst [vmem:[%s299 + $0x10] sm:$0xff] %v1586
        %1707 = vst [vmem:[%s299 + $0x18] sm:$0xff] %v1589
        %1708 = vst [vmem:[%s299 + $0x20] sm:$0xff] %v1594
        %1709 = vst [vmem:[%s299 + $0x28] sm:$0xff] %v1597
        %1710 = vst [vmem:[%s299 + $0x30] sm:$0xff] %v1602
        %1711 = vst [vmem:[%s299 + $0x38] sm:$0xff] %v1605
        %1712 = vst [vmem:[%s299 + $0x40] sm:$0xff] %v1610
        %1713 = vst [vmem:[%s299 + $0x48] sm:$0xff] %v1613
        %1714 = vst [vmem:[%s299 + $0x50] sm:$0xff] %v1618
        %1715 = vst [vmem:[%s299 + $0x58] sm:$0xff] %v1621
        %1716 = vst [vmem:[%s299 + $0x60] sm:$0xff] %v1626
        %1717 = vst [vmem:[%s299 + $0x68] sm:$0xff] %v1629
        %1718 = vst [vmem:[%s299 + $0x70] sm:$0xff] %v1634
        %1719 = vst [vmem:[%s299 + $0x78] sm:$0xff] %v1637
        %1720 = vst [vmem:[%s299 + $0x80] sm:$0xff] %v1642
        %1721 = vst [vmem:[%s299 + $0x88] sm:$0xff] %v1645
        %1722 = vst [vmem:[%s299 + $0x90] sm:$0xff] %v1650
        %1723 = vst [vmem:[%s299 + $0x98] sm:$0xff] %v1653
        %1724 = vst [vmem:[%s299 + $0xa0] sm:$0xff] %v1658
        %1725 = vst [vmem:[%s299 + $0xa8] sm:$0xff] %v1661
        %1726 = vst [vmem:[%s299 + $0xb0] sm:$0xff] %v1666
        %1727 = vst [vmem:[%s299 + $0xb8] sm:$0xff] %v1669
        %1728 = vst [vmem:[%s299 + $0xc0] sm:$0xff] %v1674
        %1729 = vst [vmem:[%s299 + $0xc8] sm:$0xff] %v1677
        %1730 = vst [vmem:[%s299 + $0xd0] sm:$0xff] %v1682
        %1731 = vst [vmem:[%s299 + $0xd8] sm:$0xff] %v1685
        %1732 = vst [vmem:[%s299 + $0xe0] sm:$0xff] %v1690
        %1733 = vst [vmem:[%s299 + $0xe8] sm:$0xff] %v1693
        %1734 = vst [vmem:[%s299 + $0xf0] sm:$0xff] %v1698
        %1735 = vst [vmem:[%s299 + $0xf8] sm:$0xff] %v1701
        %s1736 = sand.u32 %s203, 1
        %s1737 = scalar_lea.sflag [#allocation3], %s1736
        %s1738 = sand.u32 %s203, 1
        %s1739 = smul.addr %s1738, 256
        %s1740 = scalar_lea.vmem [#allocation2], %s1739
        // Predicated region
        $region53: #{net_forward.1} parent=51 // pred_check
          %p1741 = pneg %p213
        $region54: #{net_forward.1} parent=51 // pred_check_branch
          %1743 = sbr.rel (%p1741) target = $region56
        $region55: #{net_forward.1} parent=51 // pred_region
          %s1744 = smul.u32 32, %s22
          %s1746 = ssub.s32 4096, 4096
          %1747 = vsyncadd %s1737, %s1746
          %s1748 = smul.addr %s1744, 128
          %s1749 = scalar_lea.hbm %s8, %s1748
          %s1750 = sshll.u32 %s1740, 4
          %s1751 = int_to_ptr.vmem [resolvable:$true] %s1750
          %1756 = dma.vmem_to_hbm [thread:$0]  %s1751, 4096, %s1749, %s1737, 128, 128, 8
        $region56: #{net_forward.1} parent=51 // pred_fallthru
          _
      $region52: #{net_forward.1} parent=5 // pred_fallthru
        _
      %p1757 = scmp.le.s32.totalorder 2, %s17
      // Predicated region
      $region57: #{net_forward.1} parent=5 // pred_check
        %p1758 = pneg %p1757
      $region58: #{net_forward.1} parent=5 // pred_check_branch
        %1760 = sbr.rel (%p1758) target = $region60
      $region59: #{net_forward.1} parent=5 // pred_region
        %s1761 = ssub.s32 %s17, 2
        // Predicated region
        $region61: #{net_forward.1} parent=59 // pred_check
          %p1762 = pneg %p219
        $region62: #{net_forward.1} parent=59 // pred_check_branch
          %1764 = sbr.rel (%p1762) target = $region64
        $region63: #{net_forward.1} parent=59 // pred_region
          %s1765 = sand.u32 %s204, 1
          %s1766 = scalar_lea.sflag [#allocation3], %s1765
          %s1767 = sand.u32 %s204, 1
          %s1768 = smul.addr %s1767, 256
          %s1769 = scalar_lea.vmem [#allocation2], %s1768
          %1770 = dma.done %s1766, 4096
        $region64: #{net_forward.1} parent=59 // pred_fallthru
          _
      $region60: #{net_forward.1} parent=5 // pred_fallthru
        _
    $region6: #{net_forward.1} parent=1 // loop_footer
      %s21 = sadd.s32 1, %s17
    $region7: #{net_forward.1} parent=1 // loop_footer_branch
      %16 = sbr.rel target = $region3
    $region8: #{net_forward.1} parent=1 // loop_exit
      _
    %1771 = vsyncpa [#allocation3], 1
    %s1772 = scalar_lea.sflag [#allocation3], 1
    %1773 = vsyncpa %s1772, 1

</llo_original>
